<compile_context>
chip_gen: v6e
topology: v6e:2x2x1
jax: 0.10.0
libtpu: 0.0.40
codegen_flags: <defaults>
</compile_context>

<pallas_src>
import functools

import jax
import jax.numpy as jnp
from jax.experimental import pallas as pl
from jax.experimental.pallas import tpu as pltpu

DROPOUT_RATE = 0.5


def _decoder_kernel(*refs, hidden_size, training):
    """One vocab tile per grid step; LSTM step runs only on tile 0."""
    if training:
        (x_ref, h_ref, c_ref, mask_h_ref, mask_o_ref,
         wih_ref, whh_ref, bias_ref, wout_ref, bout_ref,
         logits_ref, hout_ref, cout_ref, lse_ref,
         hproj_ref, m_ref, s_ref) = refs
    else:
        (x_ref, h_ref, c_ref,
         wih_ref, whh_ref, bias_ref, wout_ref, bout_ref,
         logits_ref, hout_ref, cout_ref, lse_ref,
         hproj_ref, m_ref, s_ref) = refs
        mask_h_ref = mask_o_ref = None

    H = hidden_size
    j = pl.program_id(0)

    # ---- LSTM single step: compute once, cache projection input in VMEM ----
    @pl.when(j == 0)
    def _():
        h = h_ref[...].astype(jnp.float32)                       # (B, H)
        if training:
            h = h * mask_h_ref[...]                              # dropout(h)
        x_bf = x_ref[...]                                        # bf16 (B, H)
        h_bf = h.astype(jnp.bfloat16)

        gates = (jnp.dot(x_bf, wih_ref[...],
                         preferred_element_type=jnp.float32)
                 + jnp.dot(h_bf, whh_ref[...],
                           preferred_element_type=jnp.float32)
                 + bias_ref[...])                                # (B, 4H) f32

        # H is a multiple of 128 -> each gate slice is lane-aligned.
        i_g = jax.nn.sigmoid(gates[:, 0 * H:1 * H])
        f_g = jax.nn.sigmoid(gates[:, 1 * H:2 * H])
        g_g = jnp.tanh(gates[:, 2 * H:3 * H])
        o_g = jax.nn.sigmoid(gates[:, 3 * H:4 * H])

        c_new = f_g * c_ref[...] + i_g * g_g
        h_new = o_g * jnp.tanh(c_new)

        hout_ref[...] = h_new
        cout_ref[...] = c_new

        proj_in = h_new
        if training:
            proj_in = proj_in * mask_o_ref[...]                  # dropout(h')
        hproj_ref[...] = proj_in.astype(jnp.bfloat16)

        # Init online-logsumexp state.
        m_ref[...] = jnp.full(m_ref.shape, -jnp.inf, dtype=jnp.float32)
        s_ref[...] = jnp.zeros(s_ref.shape, dtype=jnp.float32)

    # ---- Vocab tile: projection + online logsumexp ----
    logits = (jnp.dot(hproj_ref[...], wout_ref[...],
                      preferred_element_type=jnp.float32)
              + bout_ref[...])                                   # (B, TILE_V)
    logits_ref[...] = logits

    m_prev = m_ref[...]
    m_new = jnp.maximum(m_prev, jnp.max(logits, axis=1, keepdims=True))
    s_new = (s_ref[...] * jnp.exp(m_prev - m_new)
             + jnp.sum(jnp.exp(logits - m_new), axis=1, keepdims=True))
    m_ref[...] = m_new
    s_ref[...] = s_new
    # Last write (final tile) is the one that gets flushed to HBM.
    lse_ref[...] = m_new + jnp.log(s_new)


def decoder_forward(token, hidden, c, params, *,
                    validation=True, dropout_key=None, tile_v=128):
    """token: (B,) int32 ; hidden, c: (1, B, H) float32 (PyTorch layout)."""
    emb = params["embedding"]                       # (V, H) bf16
    wih_t = params["w_ih_t"]                        # (H, 4H) bf16, pre-transposed
    whh_t = params["w_hh_t"]                        # (H, 4H) bf16
    bias = params["bias"]                           # (1, 4H) f32 (b_ih + b_hh)
    wout_t = params["w_out_t"]                      # (H, V)  bf16
    bout = params["b_out"]                          # (1, V)  f32

    B = token.shape[0]
    H = wih_t.shape[0]
    V = wout_t.shape[1]
    tile_v = min(tile_v, V)
    assert V % tile_v == 0, "vocab_size must be a multiple of tile_v"

    # Embedding gather (glue, not the hot path).
    # TODO(synk): could be fused into the kernel via scalar-prefetched token
    # indices + per-row DMA from an HBM-resident table.
    x = jnp.take(emb, token, axis=0)                # (B, H) bf16
    h0 = hidden[0]                                  # (B, H) f32
    c0 = c[0]                                       # (B, H) f32

    training = not validation
    args = [x, h0, c0]
    full2d = lambda shape: pl.BlockSpec(shape, lambda j: (0, 0))
    in_specs = [full2d((B, H)), full2d((B, H)), full2d((B, H))]

    if training:
        # TODO(synk): dropout mask uses jax.random, so the exact random stream
        # differs from torch.nn.functional.dropout; pass a fresh key per step.
        if dropout_key is None:
            dropout_key = jax.random.PRNGKey(0)
        keep = 1.0 - DROPOUT_RATE
        k1, k2 = jax.random.split(dropout_key)
        mask_h = jax.random.bernoulli(k1, keep, (B, H)).astype(jnp.float32) / keep
        mask_o = jax.random.bernoulli(k2, keep, (B, H)).astype(jnp.float32) / keep
        args += [mask_h, mask_o]
        in_specs += [full2d((B, H)), full2d((B, H))]

    args += [wih_t, whh_t, bias, wout_t, bout]
    in_specs += [
        full2d((H, 4 * H)),                                   # w_ih^T
        full2d((H, 4 * H)),                                   # w_hh^T
        full2d((1, 4 * H)),                                   # bias
        pl.BlockSpec((H, tile_v), lambda j: (0, j)),          # w_out^T tile
        pl.BlockSpec((1, tile_v), lambda j: (0, j)),          # b_out tile
    ]

    kernel = functools.partial(_decoder_kernel,
                               hidden_size=H, training=training)

    logits, h_new, c_new, lse = pl.pallas_call(
        kernel,
        grid=(V // tile_v,),
        in_specs=in_specs,
        out_specs=(
            pl.BlockSpec((B, tile_v), lambda j: (0, j)),      # raw logits
            pl.BlockSpec((B, H), lambda j: (0, 0)),           # h'
            pl.BlockSpec((B, H), lambda j: (0, 0)),           # c'
            pl.BlockSpec((B, 1), lambda j: (0, 0)),           # logsumexp
        ),
        out_shape=(
            jax.ShapeDtypeStruct((B, V), jnp.float32),
            jax.ShapeDtypeStruct((B, H), jnp.float32),
            jax.ShapeDtypeStruct((B, H), jnp.float32),
            jax.ShapeDtypeStruct((B, 1), jnp.float32),
        ),
        scratch_shapes=[
            pltpu.VMEM((B, H), jnp.bfloat16),   # cached projection input h'
            pltpu.VMEM((B, 1), jnp.float32),    # running max
            pltpu.VMEM((B, 1), jnp.float32),    # running sum
        ],
        compiler_params=pltpu.CompilerParams(
            dimension_semantics=("arbitrary",)),
    )(*args)

    vocab_probs = logits - lse                       # log_softmax finalize
    return vocab_probs, h_new[None], c_new[None]


def _reference_forward(token, hidden, c, params):
    """Pure-JAX reference for the validation=True path (same bf16 weights)."""
    H = params["w_ih_t"].shape[0]
    x = jnp.take(params["embedding"], token, axis=0)            # bf16
    h = hidden[0].astype(jnp.bfloat16)
    c0 = c[0]
    gates = (jnp.dot(x, params["w_ih_t"], preferred_element_type=jnp.float32)
             + jnp.dot(h, params["w_hh_t"], preferred_element_type=jnp.float32)
             + params["bias"])
    i_g = jax.nn.sigmoid(gates[:, 0 * H:1 * H])
    f_g = jax.nn.sigmoid(gates[:, 1 * H:2 * H])
    g_g = jnp.tanh(gates[:, 2 * H:3 * H])
    o_g = jax.nn.sigmoid(gates[:, 3 * H:4 * H])
    c_new = f_g * c0 + i_g * g_g
    h_new = o_g * jnp.tanh(c_new)
    logits = (jnp.dot(h_new.astype(jnp.bfloat16), params["w_out_t"],
                      preferred_element_type=jnp.float32)
              + params["b_out"])
    probs = jax.nn.log_softmax(logits, axis=1)
    return probs, h_new[None], c_new[None]


def _init_params(key, hidden_size, vocab_size):
    """Weights stored pre-transposed ([in, out]) and in bf16, biases pre-folded."""
    ks = jax.random.split(key, 7)
    s = 0.1
    H, V = hidden_size, vocab_size
    w_ih = jax.random.normal(ks[1], (4 * H, H), jnp.float32) * s
    w_hh = jax.random.normal(ks[2], (4 * H, H), jnp.float32) * s
    b_ih = jax.random.normal(ks[3], (4 * H,), jnp.float32) * s
    b_hh = jax.random.normal(ks[4], (4 * H,), jnp.float32) * s
    w_out = jax.random.normal(ks[5], (V, H), jnp.float32) * s
    b_out = jax.random.normal(ks[6], (V,), jnp.float32) * s
    return {
        "embedding": (jax.random.normal(ks[0], (V, H), jnp.float32) * s
                      ).astype(jnp.bfloat16),
        "w_ih_t": w_ih.T.astype(jnp.bfloat16),        # (H, 4H)
        "w_hh_t": w_hh.T.astype(jnp.bfloat16),        # (H, 4H)
        "bias": (b_ih + b_hh).reshape(1, 4 * H),      # (1, 4H) f32
        "w_out_t": w_out.T.astype(jnp.bfloat16),      # (H, V)
        "b_out": b_out.reshape(1, V),                 # (1, V) f32
    }


if __name__ == "__main__":
    # Small but lane-aligned shapes: B=2, H=128 (multiple of 128 so gate
    # slices and h/c outputs are lane-dense), V=512 tiled as 4 x 128.
    B, H, V = 2, 128, 512

    key = jax.random.PRNGKey(0)
    kp, kh, kc = jax.random.split(key, 3)
    params = _init_params(kp, H, V)

    token = jnp.array([3, 7], dtype=jnp.int32)                  # (B,)
    hidden = jax.random.normal(kh, (1, B, H), jnp.float32)      # (1, B, H)
    c = jax.random.normal(kc, (1, B, H), jnp.float32)           # (1, B, H)

    # Deterministic eval path (validation=True, i.e. Decoder.eval()).
    probs, h_new, c_new = decoder_forward(token, hidden, c, params,
                                          validation=True)
    jax.block_until_ready((probs, h_new, c_new))

    # Check against a pure-JAX reference using the same bf16 weights.
    ref_probs, ref_h, ref_c = _reference_forward(token, hidden, c, params)
    assert jnp.allclose(probs, ref_probs, atol=1e-2, rtol=1e-2)
    assert jnp.allclose(h_new, ref_h, atol=1e-2, rtol=1e-2)
    assert jnp.allclose(c_new, ref_c, atol=1e-2, rtol=1e-2)

    # Training path (dropout masks generated with jax.random) — exercise it.
    probs_tr, h_tr, c_tr = decoder_forward(
        token, hidden, c, params,
        validation=False, dropout_key=jax.random.PRNGKey(1234))
    jax.block_until_ready((probs_tr, h_tr, c_tr))

    print("KERNEL_OK")
</pallas_src>

<mosaic_0001>
module attributes {stable_mosaic.version = 11 : i64} {
  func.func @_decoder_kernel(%arg0: i32, %arg1: memref<2x128xbf16, #tpu.memory_space<vmem>>, %arg2: memref<2x128xf32, #tpu.memory_space<vmem>>, %arg3: memref<2x128xf32, #tpu.memory_space<vmem>>, %arg4: memref<128x512xbf16, #tpu.memory_space<vmem>>, %arg5: memref<128x512xbf16, #tpu.memory_space<vmem>>, %arg6: memref<1x512xf32, #tpu.memory_space<vmem>>, %arg7: memref<128x128xbf16, #tpu.memory_space<vmem>>, %arg8: memref<1x128xf32, #tpu.memory_space<vmem>>, %arg9: memref<2x128xf32, #tpu.memory_space<vmem>>, %arg10: memref<2x128xf32, #tpu.memory_space<vmem>>, %arg11: memref<2x128xf32, #tpu.memory_space<vmem>>, %arg12: memref<2x1xf32, #tpu.memory_space<vmem>>, %arg13: memref<2x128xbf16, #tpu.memory_space<vmem>>, %arg14: memref<2x1xf32, #tpu.memory_space<vmem>>, %arg15: memref<2x1xf32, #tpu.memory_space<vmem>>) attributes {dimension_semantics = [#tpu.dimension_semantics<arbitrary>], iteration_bounds = array<i64: 4>, scalar_prefetch = 0 : i64, scratch_operands = 3 : i64, tpu.core_type = #tpu.core_type<tc>, window_params = [{pipeline_mode = #tpu.pipeline_mode<synchronous>, transform_indices = @transform_0, window_bounds = array<i64: 2, 128>}, {pipeline_mode = #tpu.pipeline_mode<synchronous>, transform_indices = @transform_1, window_bounds = array<i64: 2, 128>}, {pipeline_mode = #tpu.pipeline_mode<synchronous>, transform_indices = @transform_2, window_bounds = array<i64: 2, 128>}, {pipeline_mode = #tpu.pipeline_mode<synchronous>, transform_indices = @transform_3, window_bounds = array<i64: 128, 512>}, {pipeline_mode = #tpu.pipeline_mode<synchronous>, transform_indices = @transform_4, window_bounds = array<i64: 128, 512>}, {pipeline_mode = #tpu.pipeline_mode<synchronous>, transform_indices = @transform_5, window_bounds = array<i64: 1, 512>}, {transform_indices = @transform_6, window_bounds = array<i64: 128, 128>}, {transform_indices = @transform_7, window_bounds = array<i64: 1, 128>}, {transform_indices = @transform_8, window_bounds = array<i64: 2, 128>}, {pipeline_mode = #tpu.pipeline_mode<synchronous>, transform_indices = @transform_9, window_bounds = array<i64: 2, 128>}, {pipeline_mode = #tpu.pipeline_mode<synchronous>, transform_indices = @transform_10, window_bounds = array<i64: 2, 128>}, {pipeline_mode = #tpu.pipeline_mode<synchronous>, transform_indices = @transform_11, window_bounds = array<i64: 2, 1>}]} {
    %c0_i32 = arith.constant 0 : i32
    %0 = arith.cmpi eq, %arg0, %c0_i32 : i32
    %1 = arith.extui %0 : i1 to i32
    %c0_i32_0 = arith.constant 0 : i32
    %2 = arith.cmpi ne, %1, %c0_i32_0 : i32
    scf.if %2 {
      %c0_20 = arith.constant 0 : index
      %c0_21 = arith.constant 0 : index
      %29 = vector.load %arg2[%c0_20, %c0_21] : memref<2x128xf32, #tpu.memory_space<vmem>>, vector<2x128xf32>
      %c0_22 = arith.constant 0 : index
      %c0_23 = arith.constant 0 : index
      %30 = vector.load %arg1[%c0_22, %c0_23] : memref<2x128xbf16, #tpu.memory_space<vmem>>, vector<2x128xbf16>
      %31 = arith.truncf %29 : vector<2x128xf32> to vector<2x128xbf16>
      %c0_24 = arith.constant 0 : index
      %c0_25 = arith.constant 0 : index
      %32 = vector.load %arg4[%c0_24, %c0_25] : memref<128x512xbf16, #tpu.memory_space<vmem>>, vector<128x512xbf16>
      %cst_26 = arith.constant dense<0.000000e+00> : vector<2x512xf32>
      %33 = tpu.matmul %30, %32, %cst_26 {dimension_numbers = #tpu.dot_dimension_numbers<[1], [0], [0], [1], [0, 0, 1, 1], [], []>} : vector<2x128xbf16>, vector<128x512xbf16>, vector<2x512xf32> -> vector<2x512xf32>
      %c0_27 = arith.constant 0 : index
      %c0_28 = arith.constant 0 : index
      %34 = vector.load %arg5[%c0_27, %c0_28] : memref<128x512xbf16, #tpu.memory_space<vmem>>, vector<128x512xbf16>
      %cst_29 = arith.constant dense<0.000000e+00> : vector<2x512xf32>
      %35 = tpu.matmul %31, %34, %cst_29 {dimension_numbers = #tpu.dot_dimension_numbers<[1], [0], [0], [1], [0, 0, 1, 1], [], []>} : vector<2x128xbf16>, vector<128x512xbf16>, vector<2x512xf32> -> vector<2x512xf32>
      %36 = arith.addf %33, %35 : vector<2x512xf32>
      %c0_30 = arith.constant 0 : index
      %c0_31 = arith.constant 0 : index
      %37 = vector.load %arg6[%c0_30, %c0_31] : memref<1x512xf32, #tpu.memory_space<vmem>>, vector<1x512xf32>
      %38 = vector.broadcast %37 : vector<1x512xf32> to vector<2x512xf32>
      %39 = arith.addf %36, %38 : vector<2x512xf32>
      %40 = vector.extract_strided_slice %39 {offsets = [0, 0], sizes = [2, 128], strides = [1, 1]} : vector<2x512xf32> to vector<2x128xf32>
      %41 = arith.negf %40 : vector<2x128xf32>
      %42 = math.exp %41 : vector<2x128xf32>
      %cst_32 = arith.constant 1.000000e+00 : f32
      %43 = vector.broadcast %cst_32 : f32 to vector<2x128xf32>
      %44 = arith.addf %43, %42 : vector<2x128xf32>
      %45 = arith.divf %43, %44 : vector<2x128xf32>
      %46 = vector.extract_strided_slice %39 {offsets = [0, 128], sizes = [2, 128], strides = [1, 1]} : vector<2x512xf32> to vector<2x128xf32>
      %47 = arith.negf %46 : vector<2x128xf32>
      %48 = math.exp %47 : vector<2x128xf32>
      %cst_33 = arith.constant 1.000000e+00 : f32
      %49 = vector.broadcast %cst_33 : f32 to vector<2x128xf32>
      %50 = arith.addf %49, %48 : vector<2x128xf32>
      %51 = arith.divf %49, %50 : vector<2x128xf32>
      %52 = vector.extract_strided_slice %39 {offsets = [0, 256], sizes = [2, 128], strides = [1, 1]} : vector<2x512xf32> to vector<2x128xf32>
      %53 = math.tanh %52 : vector<2x128xf32>
      %54 = vector.extract_strided_slice %39 {offsets = [0, 384], sizes = [2, 128], strides = [1, 1]} : vector<2x512xf32> to vector<2x128xf32>
      %55 = arith.negf %54 : vector<2x128xf32>
      %56 = math.exp %55 : vector<2x128xf32>
      %cst_34 = arith.constant 1.000000e+00 : f32
      %57 = vector.broadcast %cst_34 : f32 to vector<2x128xf32>
      %58 = arith.addf %57, %56 : vector<2x128xf32>
      %59 = arith.divf %57, %58 : vector<2x128xf32>
      %c0_35 = arith.constant 0 : index
      %c0_36 = arith.constant 0 : index
      %60 = vector.load %arg3[%c0_35, %c0_36] : memref<2x128xf32, #tpu.memory_space<vmem>>, vector<2x128xf32>
      %61 = arith.mulf %51, %60 : vector<2x128xf32>
      %62 = arith.mulf %45, %53 : vector<2x128xf32>
      %63 = arith.addf %61, %62 : vector<2x128xf32>
      %64 = math.tanh %63 : vector<2x128xf32>
      %65 = arith.mulf %59, %64 : vector<2x128xf32>
      %c0_37 = arith.constant 0 : index
      %c0_38 = arith.constant 0 : index
      %66 = vector.load %arg10[%c0_37, %c0_38] : memref<2x128xf32, #tpu.memory_space<vmem>>, vector<2x128xf32>
      tpu.vector_store %arg10[%c0_37, %c0_38], %65 {strides = array<i32>} : memref<2x128xf32, #tpu.memory_space<vmem>>, vector<2x128xf32>,
      %c0_39 = arith.constant 0 : index
      %c0_40 = arith.constant 0 : index
      %67 = vector.load %arg11[%c0_39, %c0_40] : memref<2x128xf32, #tpu.memory_space<vmem>>, vector<2x128xf32>
      tpu.vector_store %arg11[%c0_39, %c0_40], %63 {strides = array<i32>} : memref<2x128xf32, #tpu.memory_space<vmem>>, vector<2x128xf32>,
      %68 = arith.truncf %65 : vector<2x128xf32> to vector<2x128xbf16>
      %c0_41 = arith.constant 0 : index
      %c0_42 = arith.constant 0 : index
      %69 = vector.load %arg13[%c0_41, %c0_42] : memref<2x128xbf16, #tpu.memory_space<vmem>>, vector<2x128xbf16>
      tpu.vector_store %arg13[%c0_41, %c0_42], %68 {strides = array<i32>} : memref<2x128xbf16, #tpu.memory_space<vmem>>, vector<2x128xbf16>,
      %cst_43 = arith.constant 0xFF800000 : f32
      %70 = vector.broadcast %cst_43 : f32 to vector<2x1xf32>
      %c0_44 = arith.constant 0 : index
      %c0_45 = arith.constant 0 : index
      %71 = vector.load %arg14[%c0_44, %c0_45] : memref<2x1xf32, #tpu.memory_space<vmem>>, vector<2x1xf32>
      tpu.vector_store %arg14[%c0_44, %c0_45], %70 {strides = array<i32>} : memref<2x1xf32, #tpu.memory_space<vmem>>, vector<2x1xf32>,
      %cst_46 = arith.constant 0.000000e+00 : f32
      %72 = vector.broadcast %cst_46 : f32 to vector<2x1xf32>
      %c0_47 = arith.constant 0 : index
      %c0_48 = arith.constant 0 : index
      %73 = vector.load %arg15[%c0_47, %c0_48] : memref<2x1xf32, #tpu.memory_space<vmem>>, vector<2x1xf32>
      tpu.vector_store %arg15[%c0_47, %c0_48], %72 {strides = array<i32>} : memref<2x1xf32, #tpu.memory_space<vmem>>, vector<2x1xf32>,
    } else {
    }
    %c0 = arith.constant 0 : index
    %c0_1 = arith.constant 0 : index
    %3 = vector.load %arg13[%c0, %c0_1] : memref<2x128xbf16, #tpu.memory_space<vmem>>, vector<2x128xbf16>
    %c0_2 = arith.constant 0 : index
    %c0_3 = arith.constant 0 : index
    %4 = vector.load %arg7[%c0_2, %c0_3] : memref<128x128xbf16, #tpu.memory_space<vmem>>, vector<128x128xbf16>
    %cst = arith.constant dense<0.000000e+00> : vector<2x128xf32>
    %5 = tpu.matmul %3, %4, %cst {dimension_numbers = #tpu.dot_dimension_numbers<[1], [0], [0], [1], [0, 0, 1, 1], [], []>} : vector<2x128xbf16>, vector<128x128xbf16>, vector<2x128xf32> -> vector<2x128xf32>
    %c0_4 = arith.constant 0 : index
    %c0_5 = arith.constant 0 : index
    %6 = vector.load %arg8[%c0_4, %c0_5] : memref<1x128xf32, #tpu.memory_space<vmem>>, vector<1x128xf32>
    %7 = vector.broadcast %6 : vector<1x128xf32> to vector<2x128xf32>
    %8 = arith.addf %5, %7 : vector<2x128xf32>
    %c0_6 = arith.constant 0 : index
    %c0_7 = arith.constant 0 : index
    %9 = vector.load %arg9[%c0_6, %c0_7] : memref<2x128xf32, #tpu.memory_space<vmem>>, vector<2x128xf32>
    tpu.vector_store %arg9[%c0_6, %c0_7], %8 {strides = array<i32>} : memref<2x128xf32, #tpu.memory_space<vmem>>, vector<2x128xf32>,
    %c0_8 = arith.constant 0 : index
    %c0_9 = arith.constant 0 : index
    %10 = vector.load %arg14[%c0_8, %c0_9] : memref<2x1xf32, #tpu.memory_space<vmem>>, vector<2x1xf32>
    %cst_10 = arith.constant dense<0xFF800000> : vector<2xf32>
    %11 = vector.multi_reduction <maximumf>, %8, %cst_10 [1] : vector<2x128xf32> to vector<2xf32>
    %12 = vector.shape_cast %11 : vector<2xf32> to vector<2x1xf32>
    %13 = arith.maximumf %10, %12 : vector<2x1xf32>
    %c0_11 = arith.constant 0 : index
    %c0_12 = arith.constant 0 : index
    %14 = vector.load %arg15[%c0_11, %c0_12] : memref<2x1xf32, #tpu.memory_space<vmem>>, vector<2x1xf32>
    %15 = arith.subf %10, %13 : vector<2x1xf32>
    %16 = math.exp %15 : vector<2x1xf32>
    %17 = arith.mulf %14, %16 : vector<2x1xf32>
    %18 = vector.broadcast %13 : vector<2x1xf32> to vector<2x128xf32>
    %19 = arith.subf %8, %18 : vector<2x128xf32>
    %20 = math.exp %19 : vector<2x128xf32>
    %cst_13 = arith.constant dense<0.000000e+00> : vector<2xf32>
    %21 = vector.multi_reduction <add>, %20, %cst_13 [1] : vector<2x128xf32> to vector<2xf32>
    %22 = vector.shape_cast %21 : vector<2xf32> to vector<2x1xf32>
    %23 = arith.addf %17, %22 : vector<2x1xf32>
    %c0_14 = arith.constant 0 : index
    %c0_15 = arith.constant 0 : index
    %24 = vector.load %arg14[%c0_14, %c0_15] : memref<2x1xf32, #tpu.memory_space<vmem>>, vector<2x1xf32>
    tpu.vector_store %arg14[%c0_14, %c0_15], %13 {strides = array<i32>} : memref<2x1xf32, #tpu.memory_space<vmem>>, vector<2x1xf32>,
    %c0_16 = arith.constant 0 : index
    %c0_17 = arith.constant 0 : index
    %25 = vector.load %arg15[%c0_16, %c0_17] : memref<2x1xf32, #tpu.memory_space<vmem>>, vector<2x1xf32>
    tpu.vector_store %arg15[%c0_16, %c0_17], %23 {strides = array<i32>} : memref<2x1xf32, #tpu.memory_space<vmem>>, vector<2x1xf32>,
    %26 = math.log %23 : vector<2x1xf32>
    %27 = arith.addf %13, %26 : vector<2x1xf32>
    %c0_18 = arith.constant 0 : index
    %c0_19 = arith.constant 0 : index
    %28 = vector.load %arg12[%c0_18, %c0_19] : memref<2x1xf32, #tpu.memory_space<vmem>>, vector<2x1xf32>
    tpu.vector_store %arg12[%c0_18, %c0_19], %27 {strides = array<i32>} : memref<2x1xf32, #tpu.memory_space<vmem>>, vector<2x1xf32>,
    return
  }
  func.func @transform_0(%arg0: i32) -> (i32, i32) {
    %c0_i32 = arith.constant 0 : i32
    %c0_i32_0 = arith.constant 0 : i32
    %c0_i32_1 = arith.constant 0 : i32
    return %c0_i32, %c0_i32_0 : i32, i32
  }
  func.func @transform_1(%arg0: i32) -> (i32, i32) {
    %c0_i32 = arith.constant 0 : i32
    %c0_i32_0 = arith.constant 0 : i32
    %c0_i32_1 = arith.constant 0 : i32
    return %c0_i32, %c0_i32_0 : i32, i32
  }
  func.func @transform_2(%arg0: i32) -> (i32, i32) {
    %c0_i32 = arith.constant 0 : i32
    %c0_i32_0 = arith.constant 0 : i32
    %c0_i32_1 = arith.constant 0 : i32
    return %c0_i32, %c0_i32_0 : i32, i32
  }
  func.func @transform_3(%arg0: i32) -> (i32, i32) {
    %c0_i32 = arith.constant 0 : i32
    %c0_i32_0 = arith.constant 0 : i32
    %c0_i32_1 = arith.constant 0 : i32
    return %c0_i32, %c0_i32_0 : i32, i32
  }
  func.func @transform_4(%arg0: i32) -> (i32, i32) {
    %c0_i32 = arith.constant 0 : i32
    %c0_i32_0 = arith.constant 0 : i32
    %c0_i32_1 = arith.constant 0 : i32
    return %c0_i32, %c0_i32_0 : i32, i32
  }
  func.func @transform_5(%arg0: i32) -> (i32, i32) {
    %c0_i32 = arith.constant 0 : i32
    %c0_i32_0 = arith.constant 0 : i32
    %c0_i32_1 = arith.constant 0 : i32
    return %c0_i32, %c0_i32_0 : i32, i32
  }
  func.func @transform_6(%arg0: i32) -> (i32, i32) {
    %c0_i32 = arith.constant 0 : i32
    %c0_i32_0 = arith.constant 0 : i32
    return %c0_i32, %arg0 : i32, i32
  }
  func.func @transform_7(%arg0: i32) -> (i32, i32) {
    %c0_i32 = arith.constant 0 : i32
    %c0_i32_0 = arith.constant 0 : i32
    return %c0_i32, %arg0 : i32, i32
  }
  func.func @transform_8(%arg0: i32) -> (i32, i32) {
    %c0_i32 = arith.constant 0 : i32
    %c0_i32_0 = arith.constant 0 : i32
    return %c0_i32, %arg0 : i32, i32
  }
  func.func @transform_9(%arg0: i32) -> (i32, i32) {
    %c0_i32 = arith.constant 0 : i32
    %c0_i32_0 = arith.constant 0 : i32
    %c0_i32_1 = arith.constant 0 : i32
    return %c0_i32, %c0_i32_0 : i32, i32
  }
  func.func @transform_10(%arg0: i32) -> (i32, i32) {
    %c0_i32 = arith.constant 0 : i32
    %c0_i32_0 = arith.constant 0 : i32
    %c0_i32_1 = arith.constant 0 : i32
    return %c0_i32, %c0_i32_0 : i32, i32
  }
  func.func @transform_11(%arg0: i32) -> (i32, i32) {
    %c0_i32 = arith.constant 0 : i32
    %c0_i32_0 = arith.constant 0 : i32
    %c0_i32_1 = arith.constant 0 : i32
    return %c0_i32, %c0_i32_0 : i32, i32
  }
}

</mosaic_0001>

<llo_original>
// kernel: tpu_custom_call.1
$region0: #{tpu_custom_call.1}
  #allocation0 [shape = 'u32[]', space=smem, size = 0x4, offset = 0x4, fixed_abs, tag = 'smem constant byte address 0x4 - core index']
  #allocation1 [shape = 'u32[144,128]{1,0:T(1,128)}', space=vmem, size = 0x12000, scoped, tag = 'internal scratch']
  #allocation2 [shape = 'bf16[2,128]{1,0:T(2,128)(2,1)}', space=vmem, size = 0x200, scoped, tag = 'scratch operand']
  #allocation3 [shape = 'f32[2,1]{1,0:T(2,128)}', space=vmem, size = 0x400, scoped, tag = 'scratch operand']
  #allocation4 [shape = 'f32[2,1]{1,0:T(2,128)}', space=vmem, size = 0x400, scoped, tag = 'scratch operand']
  %s0 = inlined_call_operand.hbm [shape: bf16[2,128], index: 0, kind: input, shape index: {}]
  %s1 = inlined_call_operand.hbm [shape: f32[2,128], index: 1, kind: input, shape index: {}]
  %s2 = inlined_call_operand.hbm [shape: f32[2,128], index: 2, kind: input, shape index: {}]
  %s3 = inlined_call_operand.hbm [shape: bf16[128,512], index: 3, kind: input, shape index: {}]
  %s4 = inlined_call_operand.hbm [shape: bf16[128,512], index: 4, kind: input, shape index: {}]
  %s5 = inlined_call_operand.vmem [shape: f32[1,512], index: 5, kind: input, shape index: {}]
  %s6 = inlined_call_operand.hbm [shape: bf16[128,512], index: 6, kind: input, shape index: {}]
  %s7 = inlined_call_operand.vmem [shape: f32[1,512], index: 7, kind: input, shape index: {}]
  %s8 = inlined_call_operand.hbm [shape: f32[2,512], index: 8, kind: output, shape index: {0}]
  %s9 = inlined_call_operand.hbm [shape: f32[2,128], index: 9, kind: output, shape index: {1}]
  %s10 = inlined_call_operand.hbm [shape: f32[2,128], index: 10, kind: output, shape index: {2}]
  %s11 = inlined_call_operand.vmem [shape: f32[2,1], index: 11, kind: output, shape index: {3}]
  %12 = xla_tuple %s8, %s9, %s10, %s11
  %s13 = sld [smem:[#allocation0]]
  $region117: #{tpu_custom_call.1} parent=0
    _
  %s15 = ssub.s32 1, %s13
  %s16 = scalar_select 0, %s15, %s13
  $region1: #{tpu_custom_call.1} parent=0
    #allocation5 [shape = 'u8[512]{0}', space=vmem, size = 0x400, scoped, tag = 'input window, operand 0, single buffered']
    #allocation6 [shape = 's32[2]{0}', space=sflag, size = 0x8, scoped, tag = 'scoped memory for tpu_custom_call.1']
    #allocation7 [shape = 's32[2]{0}', space=sflag, size = 0x8, scoped, tag = 'scoped memory for tpu_custom_call.1']
    #allocation8 [shape = 'u8[1024]{0}', space=vmem, size = 0x400, scoped, tag = 'input window, operand 1, single buffered']
    #allocation9 [shape = 's32[1]{0}', space=sflag, size = 0x4, scoped, tag = 'scoped memory for tpu_custom_call.1']
    #allocation10 [shape = 'u8[1024]{0}', space=vmem, size = 0x400, scoped, tag = 'input window, operand 2, single buffered']
    #allocation11 [shape = 'u8[131072]{0}', space=vmem, size = 0x20000, scoped, tag = 'input window, operand 3, single buffered']
    #allocation12 [shape = 's32[1]{0}', space=sflag, size = 0x4, scoped, tag = 'scoped memory for tpu_custom_call.1']
    #allocation13 [shape = 'u8[131072]{0}', space=vmem, size = 0x20000, scoped, tag = 'input window, operand 4, single buffered']
    #allocation14 [shape = 'u8[65536]{0}', space=vmem, size = 0x10000, scoped, tag = 'input window, operand 6']
    #allocation15 [shape = 's32[2]{0}', space=sflag, size = 0x8, scoped, tag = 'scoped memory for tpu_custom_call.1']
    #allocation16 [shape = 'u8[2048]{0}', space=vmem, size = 0x800, scoped, tag = 'output window, operand 0']
    #allocation17 [shape = 'u8[1024]{0}', space=vmem, size = 0x400, scoped, tag = 'output window, operand 1, single buffered']
    #allocation18 [shape = 's32[1]{0}', space=sflag, size = 0x4, scoped, tag = 'scoped memory for tpu_custom_call.1']
    #allocation19 [shape = 'u8[1024]{0}', space=vmem, size = 0x400, scoped, tag = 'output window, operand 2, single buffered']
    %17 = vsyncpa [#allocation6], 0
    %18 = vsyncpa [#allocation9], 0
    %19 = vsyncpa [#allocation12], 0
    %20 = vsyncpa [#allocation15], 0
    %s21 = scalar_lea.sflag [#allocation15], 1
    %22 = vsyncpa %s21, 0
    %23 = vsyncpa [#allocation7], 0
    %s24 = scalar_lea.sflag [#allocation7], 1
    %25 = vsyncpa %s24, 0
    %26 = vsyncpa [#allocation18], 0
    loop: start=0, step=1, limit=6
    $region2: #{tpu_custom_call.1} parent=1 // loop_pre_header
      _
    $region3: #{tpu_custom_call.1} parent=1 // loop_header
      %s28 = sphi 0, %s32
      %p29 = scmp.ge.s32.totalorder %s28, 6
      %s36 = sphi 0, %s36
      %s38 = sphi 0, %s36
      %s39 = sphi 0, %s38
      %s53 = sphi 0, %s39
      %s57 = sphi 0, %s57
      %s59 = sphi 0, %s57
      %s60 = sphi 0, %s59
      %s74 = sphi 0, %s60
      %s78 = sphi 0, %s78
      %s80 = sphi 0, %s78
      %s81 = sphi 0, %s80
      %s95 = sphi 0, %s81
      %s99 = sphi 0, %s99
      %s101 = sphi 0, %s99
      %s102 = sphi 0, %s101
      %s116 = sphi 0, %s102
      %s120 = sphi 0, %s120
      %s122 = sphi 0, %s120
      %s123 = sphi 0, %s122
      %s137 = sphi 0, %s123
      %s141 = sphi 0, %s141
      %s143 = sphi 0, %s141
      %s144 = sphi 0, %s143
      %s158 = sphi 0, %s144
      %s164 = sphi 0, %s166
      %s167 = sphi 0, %s164
      %s168 = sphi 0, %s167
      %s184 = sphi 0, %s168
      %s190 = sphi 0, %s192
      %s193 = sphi 0, %s190
      %s194 = sphi 0, %s193
      %s210 = sphi 0, %s194
      %s216 = sphi 0, %s218
      %s219 = sphi 0, %s216
      %s220 = sphi 0, %s219
      %s236 = sphi 0, %s220
      %s240 = sphi 0, %s240
      %s242 = sphi 0, %s240
      %s243 = sphi 0, %s242
      %s257 = sphi 0, %s243
      %s261 = sphi 0, %s261
      %s263 = sphi 0, %s261
      %s264 = sphi 0, %s263
      %s278 = sphi 0, %s264
      %s282 = sphi 0, %s282
      %s284 = sphi 0, %s282
      %s285 = sphi 0, %s284
      %s299 = sphi 0, %s285
    $region4: #{tpu_custom_call.1} parent=1 // loop_header_branch
      %31 = sbr.rel (%p29) target = $region8
    $region5: #{tpu_custom_call.1} parent=1 // loop_body
      %s33 = ssub.s32 %s28, 1
      %s34 = ssub.s32 %s28, 2
      %s35 = sadd.s32 %s28, 1
      %s37 = sadd.s32 %s36, 1
      %p40 = scmp.eq.s32.totalorder %s28, 3
      %p41 = scmp.ne.s32.totalorder %s36, %s38
      %p42 = scmp.eq.s32.totalorder %s28, 0
      %p43 = por %p41, %p42
      %p44 = scmp.ne.s32.totalorder %s36, %s38
      %p45 = scmp.eq.s32.totalorder %s33, 3
      %p46 = por %p44, %p45
      %p47 = scmp.ne.s32.totalorder %s38, %s39
      %p48 = scmp.eq.s32.totalorder %s33, 0
      %p49 = por %p47, %p48
      %p50 = scmp.ne.s32.totalorder %s38, %s39
      %p51 = scmp.eq.s32.totalorder %s34, 3
      %p52 = por %p50, %p51
      %p54 = scmp.ne.s32.totalorder %s39, %s53
      %p55 = scmp.eq.s32.totalorder %s34, 0
      %p56 = por %p54, %p55
      %s58 = sadd.s32 %s57, 1
      %p61 = scmp.eq.s32.totalorder %s28, 3
      %p62 = scmp.ne.s32.totalorder %s57, %s59
      %p63 = scmp.eq.s32.totalorder %s28, 0
      %p64 = por %p62, %p63
      %p65 = scmp.ne.s32.totalorder %s57, %s59
      %p66 = scmp.eq.s32.totalorder %s33, 3
      %p67 = por %p65, %p66
      %p68 = scmp.ne.s32.totalorder %s59, %s60
      %p69 = scmp.eq.s32.totalorder %s33, 0
      %p70 = por %p68, %p69
      %p71 = scmp.ne.s32.totalorder %s59, %s60
      %p72 = scmp.eq.s32.totalorder %s34, 3
      %p73 = por %p71, %p72
      %p75 = scmp.ne.s32.totalorder %s60, %s74
      %p76 = scmp.eq.s32.totalorder %s34, 0
      %p77 = por %p75, %p76
      %s79 = sadd.s32 %s78, 1
      %p82 = scmp.eq.s32.totalorder %s28, 3
      %p83 = scmp.ne.s32.totalorder %s78, %s80
      %p84 = scmp.eq.s32.totalorder %s28, 0
      %p85 = por %p83, %p84
      %p86 = scmp.ne.s32.totalorder %s78, %s80
      %p87 = scmp.eq.s32.totalorder %s33, 3
      %p88 = por %p86, %p87
      %p89 = scmp.ne.s32.totalorder %s80, %s81
      %p90 = scmp.eq.s32.totalorder %s33, 0
      %p91 = por %p89, %p90
      %p92 = scmp.ne.s32.totalorder %s80, %s81
      %p93 = scmp.eq.s32.totalorder %s34, 3
      %p94 = por %p92, %p93
      %p96 = scmp.ne.s32.totalorder %s81, %s95
      %p97 = scmp.eq.s32.totalorder %s34, 0
      %p98 = por %p96, %p97
      %s100 = sadd.s32 %s99, 1
      %p103 = scmp.eq.s32.totalorder %s28, 3
      %p104 = scmp.ne.s32.totalorder %s99, %s101
      %p105 = scmp.eq.s32.totalorder %s28, 0
      %p106 = por %p104, %p105
      %p107 = scmp.ne.s32.totalorder %s99, %s101
      %p108 = scmp.eq.s32.totalorder %s33, 3
      %p109 = por %p107, %p108
      %p110 = scmp.ne.s32.totalorder %s101, %s102
      %p111 = scmp.eq.s32.totalorder %s33, 0
      %p112 = por %p110, %p111
      %p113 = scmp.ne.s32.totalorder %s101, %s102
      %p114 = scmp.eq.s32.totalorder %s34, 3
      %p115 = por %p113, %p114
      %p117 = scmp.ne.s32.totalorder %s102, %s116
      %p118 = scmp.eq.s32.totalorder %s34, 0
      %p119 = por %p117, %p118
      %s121 = sadd.s32 %s120, 1
      %p124 = scmp.eq.s32.totalorder %s28, 3
      %p125 = scmp.ne.s32.totalorder %s120, %s122
      %p126 = scmp.eq.s32.totalorder %s28, 0
      %p127 = por %p125, %p126
      %p128 = scmp.ne.s32.totalorder %s120, %s122
      %p129 = scmp.eq.s32.totalorder %s33, 3
      %p130 = por %p128, %p129
      %p131 = scmp.ne.s32.totalorder %s122, %s123
      %p132 = scmp.eq.s32.totalorder %s33, 0
      %p133 = por %p131, %p132
      %p134 = scmp.ne.s32.totalorder %s122, %s123
      %p135 = scmp.eq.s32.totalorder %s34, 3
      %p136 = por %p134, %p135
      %p138 = scmp.ne.s32.totalorder %s123, %s137
      %p139 = scmp.eq.s32.totalorder %s34, 0
      %p140 = por %p138, %p139
      %s142 = sadd.s32 %s141, 1
      %p145 = scmp.eq.s32.totalorder %s28, 3
      %p146 = scmp.ne.s32.totalorder %s141, %s143
      %p147 = scmp.eq.s32.totalorder %s28, 0
      %p148 = por %p146, %p147
      %p149 = scmp.ne.s32.totalorder %s141, %s143
      %p150 = scmp.eq.s32.totalorder %s33, 3
      %p151 = por %p149, %p150
      %p152 = scmp.ne.s32.totalorder %s143, %s144
      %p153 = scmp.eq.s32.totalorder %s33, 0
      %p154 = por %p152, %p153
      %p155 = scmp.ne.s32.totalorder %s143, %s144
      %p156 = scmp.eq.s32.totalorder %s34, 3
      %p157 = por %p155, %p156
      %p159 = scmp.ne.s32.totalorder %s144, %s158
      %p160 = scmp.eq.s32.totalorder %s34, 0
      %p161 = por %p159, %p160
      %s162 = ssub.s32 %s28, %s35
      %p163 = scmp.eq.s32.totalorder %s162, 0
      %s165 = sadd.s32 %s164, 1
      %s166 = scalar_select %p163, %s164, %s165
      %p169 = pneg %p163
      %p170 = scmp.eq.s32.totalorder %s28, 3
      %p171 = por %p169, %p170
      %p172 = scmp.ne.s32.totalorder %s164, %s167
      %p173 = scmp.eq.s32.totalorder %s28, 0
      %p174 = por %p172, %p173
      %p175 = scmp.ne.s32.totalorder %s164, %s167
      %p176 = scmp.eq.s32.totalorder %s33, 3
      %p177 = por %p175, %p176
      %p178 = scmp.ne.s32.totalorder %s167, %s168
      %p179 = scmp.eq.s32.totalorder %s33, 0
      %p180 = por %p178, %p179
      %p181 = scmp.ne.s32.totalorder %s167, %s168
      %p182 = scmp.eq.s32.totalorder %s34, 3
      %p183 = por %p181, %p182
      %p185 = scmp.ne.s32.totalorder %s168, %s184
      %p186 = scmp.eq.s32.totalorder %s34, 0
      %p187 = por %p185, %p186
      %s188 = ssub.s32 %s28, %s35
      %p189 = scmp.eq.s32.totalorder %s188, 0
      %s191 = sadd.s32 %s190, 1
      %s192 = scalar_select %p189, %s190, %s191
      %p195 = pneg %p189
      %p196 = scmp.eq.s32.totalorder %s28, 3
      %p197 = por %p195, %p196
      %p198 = scmp.ne.s32.totalorder %s190, %s193
      %p199 = scmp.eq.s32.totalorder %s28, 0
      %p200 = por %p198, %p199
      %p201 = scmp.ne.s32.totalorder %s190, %s193
      %p202 = scmp.eq.s32.totalorder %s33, 3
      %p203 = por %p201, %p202
      %p204 = scmp.ne.s32.totalorder %s193, %s194
      %p205 = scmp.eq.s32.totalorder %s33, 0
      %p206 = por %p204, %p205
      %p207 = scmp.ne.s32.totalorder %s193, %s194
      %p208 = scmp.eq.s32.totalorder %s34, 3
      %p209 = por %p207, %p208
      %p211 = scmp.ne.s32.totalorder %s194, %s210
      %p212 = scmp.eq.s32.totalorder %s34, 0
      %p213 = por %p211, %p212
      %s214 = ssub.s32 %s28, %s35
      %p215 = scmp.eq.s32.totalorder %s214, 0
      %s217 = sadd.s32 %s216, 1
      %s218 = scalar_select %p215, %s216, %s217
      %p221 = pneg %p215
      %p222 = scmp.eq.s32.totalorder %s28, 3
      %p223 = por %p221, %p222
      %p224 = scmp.ne.s32.totalorder %s216, %s219
      %p225 = scmp.eq.s32.totalorder %s28, 0
      %p226 = por %p224, %p225
      %p227 = scmp.ne.s32.totalorder %s216, %s219
      %p228 = scmp.eq.s32.totalorder %s33, 3
      %p229 = por %p227, %p228
      %p230 = scmp.ne.s32.totalorder %s219, %s220
      %p231 = scmp.eq.s32.totalorder %s33, 0
      %p232 = por %p230, %p231
      %p233 = scmp.ne.s32.totalorder %s219, %s220
      %p234 = scmp.eq.s32.totalorder %s34, 3
      %p235 = por %p233, %p234
      %p237 = scmp.ne.s32.totalorder %s220, %s236
      %p238 = scmp.eq.s32.totalorder %s34, 0
      %p239 = por %p237, %p238
      %s241 = sadd.s32 %s240, 1
      %p244 = scmp.eq.s32.totalorder %s28, 3
      %p245 = scmp.ne.s32.totalorder %s240, %s242
      %p246 = scmp.eq.s32.totalorder %s28, 0
      %p247 = por %p245, %p246
      %p248 = scmp.ne.s32.totalorder %s240, %s242
      %p249 = scmp.eq.s32.totalorder %s33, 3
      %p250 = por %p248, %p249
      %p251 = scmp.ne.s32.totalorder %s242, %s243
      %p252 = scmp.eq.s32.totalorder %s33, 0
      %p253 = por %p251, %p252
      %p254 = scmp.ne.s32.totalorder %s242, %s243
      %p255 = scmp.eq.s32.totalorder %s34, 3
      %p256 = por %p254, %p255
      %p258 = scmp.ne.s32.totalorder %s243, %s257
      %p259 = scmp.eq.s32.totalorder %s34, 0
      %p260 = por %p258, %p259
      %s262 = sadd.s32 %s261, 1
      %p265 = scmp.eq.s32.totalorder %s28, 3
      %p266 = scmp.ne.s32.totalorder %s261, %s263
      %p267 = scmp.eq.s32.totalorder %s28, 0
      %p268 = por %p266, %p267
      %p269 = scmp.ne.s32.totalorder %s261, %s263
      %p270 = scmp.eq.s32.totalorder %s33, 3
      %p271 = por %p269, %p270
      %p272 = scmp.ne.s32.totalorder %s263, %s264
      %p273 = scmp.eq.s32.totalorder %s33, 0
      %p274 = por %p272, %p273
      %p275 = scmp.ne.s32.totalorder %s263, %s264
      %p276 = scmp.eq.s32.totalorder %s34, 3
      %p277 = por %p275, %p276
      %p279 = scmp.ne.s32.totalorder %s264, %s278
      %p280 = scmp.eq.s32.totalorder %s34, 0
      %p281 = por %p279, %p280
      %s283 = sadd.s32 %s282, 1
      %p286 = scmp.eq.s32.totalorder %s28, 3
      %p287 = scmp.ne.s32.totalorder %s282, %s284
      %p288 = scmp.eq.s32.totalorder %s28, 0
      %p289 = por %p287, %p288
      %p290 = scmp.ne.s32.totalorder %s282, %s284
      %p291 = scmp.eq.s32.totalorder %s33, 3
      %p292 = por %p290, %p291
      %p293 = scmp.ne.s32.totalorder %s284, %s285
      %p294 = scmp.eq.s32.totalorder %s33, 0
      %p295 = por %p293, %p294
      %p296 = scmp.ne.s32.totalorder %s284, %s285
      %p297 = scmp.eq.s32.totalorder %s34, 3
      %p298 = por %p296, %p297
      %p300 = scmp.ne.s32.totalorder %s285, %s299
      %p301 = scmp.eq.s32.totalorder %s34, 0
      %p302 = por %p300, %p301
      %p303 = scmp.le.s32.totalorder 1, %s28
      %p304 = scmp.lt.s32.totalorder %s28, 5
      %p305 = pnand %p303, %p304
      %p306 = pneg %p305
      // Predicated region
      $region9: #{tpu_custom_call.1} parent=5 // pred_check
        _
      $region10: #{tpu_custom_call.1} parent=5 // pred_check_branch
        %308 = sbr.rel (%p305) target = $region12
      $region11: #{tpu_custom_call.1} parent=5 // pred_region
        %s309 = ssub.s32 %s28, 1
        // Predicated region
        $region13: #{tpu_custom_call.1} parent=11 // pred_check
          %p310 = pneg %p49
        $region14: #{tpu_custom_call.1} parent=11 // pred_check_branch
          %312 = sbr.rel (%p310) target = $region16
        $region15: #{tpu_custom_call.1} parent=11 // pred_region
          %s314 = ssub.s32 16, 16
          %315 = vsyncadd [#allocation6], %s314
          %s317 = sshll.u32 [#allocation5], 4
          %s318 = int_to_ptr.vmem [resolvable:$true] %s317
          %320 = dma.hbm_to_vmem [thread:$0]  %s0, 16, %s318, [#allocation6]
        $region16: #{tpu_custom_call.1} parent=11 // pred_fallthru
          _
        // Predicated region
        $region17: #{tpu_custom_call.1} parent=11 // pred_check
          %p321 = pneg %p70
        $region18: #{tpu_custom_call.1} parent=11 // pred_check_branch
          %323 = sbr.rel (%p321) target = $region20
        $region19: #{tpu_custom_call.1} parent=11 // pred_region
          %s325 = ssub.s32 32, 32
          %326 = vsyncadd [#allocation9], %s325
          %s328 = sshll.u32 [#allocation8], 4
          %s329 = int_to_ptr.vmem [resolvable:$true] %s328
          %331 = dma.hbm_to_vmem [thread:$0]  %s1, 32, %s329, [#allocation9]
        $region20: #{tpu_custom_call.1} parent=11 // pred_fallthru
          _
        // Predicated region
        $region21: #{tpu_custom_call.1} parent=11 // pred_check
          %p332 = pneg %p91
        $region22: #{tpu_custom_call.1} parent=11 // pred_check_branch
          %334 = sbr.rel (%p332) target = $region24
        $region23: #{tpu_custom_call.1} parent=11 // pred_region
          %s336 = ssub.s32 32, 32
          %337 = vsyncadd [#allocation9], %s336
          %s339 = sshll.u32 [#allocation10], 4
          %s340 = int_to_ptr.vmem [resolvable:$true] %s339
          %342 = dma.hbm_to_vmem [thread:$0]  %s2, 32, %s340, [#allocation9]
        $region24: #{tpu_custom_call.1} parent=11 // pred_fallthru
          _
        // Predicated region
        $region25: #{tpu_custom_call.1} parent=11 // pred_check
          %p343 = pneg %p112
        $region26: #{tpu_custom_call.1} parent=11 // pred_check_branch
          %345 = sbr.rel (%p343) target = $region28
        $region27: #{tpu_custom_call.1} parent=11 // pred_region
          %s347 = ssub.s32 4096, 4096
          %348 = vsyncadd [#allocation12], %s347
          %s349 = sshll.u32 [#allocation11], 4
          %s350 = int_to_ptr.vmem [resolvable:$true] %s349
          %355 = dma.hbm_to_vmem [thread:$0]  %s3, 4096, %s350, [#allocation12], 256, 256, 16
        $region28: #{tpu_custom_call.1} parent=11 // pred_fallthru
          _
        // Predicated region
        $region29: #{tpu_custom_call.1} parent=11 // pred_check
          %p356 = pneg %p133
        $region30: #{tpu_custom_call.1} parent=11 // pred_check_branch
          %358 = sbr.rel (%p356) target = $region32
        $region31: #{tpu_custom_call.1} parent=11 // pred_region
          %s360 = ssub.s32 4096, 4096
          %361 = vsyncadd [#allocation12], %s360
          %s362 = sshll.u32 [#allocation13], 4
          %s363 = int_to_ptr.vmem [resolvable:$true] %s362
          %368 = dma.hbm_to_vmem [thread:$0]  %s4, 4096, %s363, [#allocation12], 256, 256, 16
        $region32: #{tpu_custom_call.1} parent=11 // pred_fallthru
          _
        // Predicated region
        $region33: #{tpu_custom_call.1} parent=11 // pred_check
          %p369 = pneg %p154
        $region34: #{tpu_custom_call.1} parent=11 // pred_check_branch
          %371 = sbr.rel (%p369) target = $region36
        $region35: #{tpu_custom_call.1} parent=11 // pred_region
          _
        $region36: #{tpu_custom_call.1} parent=11 // pred_fallthru
          _
      $region12: #{tpu_custom_call.1} parent=5 // pred_fallthru
        _
      %p372 = scmp.lt.s32.totalorder %s28, 4
      // Predicated region
      $region37: #{tpu_custom_call.1} parent=5 // pred_check
        %p373 = pneg %p372
      $region38: #{tpu_custom_call.1} parent=5 // pred_check_branch
        %375 = sbr.rel (%p373) target = $region40
      $region39: #{tpu_custom_call.1} parent=5 // pred_region
        // Predicated region
        $region41: #{tpu_custom_call.1} parent=39 // pred_check
          %p376 = pneg %p174
        $region42: #{tpu_custom_call.1} parent=39 // pred_check_branch
          %378 = sbr.rel (%p376) target = $region44
        $region43: #{tpu_custom_call.1} parent=39 // pred_region
          %s379 = sand.u32 %s164, 1
          %s380 = scalar_lea.sflag [#allocation15], %s379
          %s381 = sand.u32 %s164, 1
          %s382 = smul.addr %s381, 64
          %s383 = scalar_lea.vmem [#allocation14], %s382
          %s385 = ssub.s32 1024, 1024
          %386 = vsyncadd %s380, %s385
          %s387 = smul.addr %s28, 64
          %s388 = scalar_lea.hbm %s6, %s387
          %s389 = sshll.u32 %s383, 4
          %s390 = int_to_ptr.vmem [resolvable:$true] %s389
          %395 = dma.hbm_to_vmem [thread:$0]  %s388, 1024, %s390, %s380, 256, 64, 4
        $region44: #{tpu_custom_call.1} parent=39 // pred_fallthru
          _
        // Predicated region
        $region45: #{tpu_custom_call.1} parent=39 // pred_check
          %p396 = pneg %p200
        $region46: #{tpu_custom_call.1} parent=39 // pred_check_branch
          %398 = sbr.rel (%p396) target = $region48
        $region47: #{tpu_custom_call.1} parent=39 // pred_region
          %p399 = scmp.lt.s32.totalorder %s28, 3
          %s400 = scalar_select %p399, %s28, 3
          %s401 = scalar_lea.vmem %s7, %s400
        $region48: #{tpu_custom_call.1} parent=39 // pred_fallthru
          _
      $region40: #{tpu_custom_call.1} parent=5 // pred_fallthru
        _
      %p402 = scmp.le.s32.totalorder 1, %s28
      %p403 = scmp.lt.s32.totalorder %s28, 5
      %p404 = pnand %p402, %p403
      %p405 = pneg %p404
      // Predicated region
      $region49: #{tpu_custom_call.1} parent=5 // pred_check
        _
      $region50: #{tpu_custom_call.1} parent=5 // pred_check_branch
        %407 = sbr.rel (%p404) target = $region52
      $region51: #{tpu_custom_call.1} parent=5 // pred_region
        %s408 = ssub.s32 %s28, 1
        // Predicated region
        $region53: #{tpu_custom_call.1} parent=51 // pred_check
          %p409 = pneg %p49
        $region54: #{tpu_custom_call.1} parent=51 // pred_check_branch
          %411 = sbr.rel (%p409) target = $region56
        $region55: #{tpu_custom_call.1} parent=51 // pred_region
          %412 = dma.done [#allocation6], 16
        $region56: #{tpu_custom_call.1} parent=51 // pred_fallthru
          _
        // Predicated region
        $region57: #{tpu_custom_call.1} parent=51 // pred_check
          %p413 = pneg %p70
        $region58: #{tpu_custom_call.1} parent=51 // pred_check_branch
          %415 = sbr.rel (%p413) target = $region60
        $region59: #{tpu_custom_call.1} parent=51 // pred_region
          %416 = dma.done [#allocation9], 32
        $region60: #{tpu_custom_call.1} parent=51 // pred_fallthru
          _
        // Predicated region
        $region61: #{tpu_custom_call.1} parent=51 // pred_check
          %p417 = pneg %p91
        $region62: #{tpu_custom_call.1} parent=51 // pred_check_branch
          %419 = sbr.rel (%p417) target = $region64
        $region63: #{tpu_custom_call.1} parent=51 // pred_region
          %420 = dma.done [#allocation9], 32
        $region64: #{tpu_custom_call.1} parent=51 // pred_fallthru
          _
        // Predicated region
        $region65: #{tpu_custom_call.1} parent=51 // pred_check
          %p421 = pneg %p112
        $region66: #{tpu_custom_call.1} parent=51 // pred_check_branch
          %423 = sbr.rel (%p421) target = $region68
        $region67: #{tpu_custom_call.1} parent=51 // pred_region
          %424 = dma.done [#allocation12], 4096
        $region68: #{tpu_custom_call.1} parent=51 // pred_fallthru
          _
        // Predicated region
        $region69: #{tpu_custom_call.1} parent=51 // pred_check
          %p425 = pneg %p133
        $region70: #{tpu_custom_call.1} parent=51 // pred_check_branch
          %427 = sbr.rel (%p425) target = $region72
        $region71: #{tpu_custom_call.1} parent=51 // pred_region
          %428 = dma.done [#allocation12], 4096
        $region72: #{tpu_custom_call.1} parent=51 // pred_fallthru
          _
        %s429 = sand.u32 %s167, 1
        %s430 = scalar_lea.sflag [#allocation15], %s429
        %s431 = sand.u32 %s167, 1
        %s432 = smul.addr %s431, 64
        %s433 = scalar_lea.vmem [#allocation14], %s432
        // Predicated region
        $region73: #{tpu_custom_call.1} parent=51 // pred_check
          %p434 = pneg %p180
        $region74: #{tpu_custom_call.1} parent=51 // pred_check_branch
          %436 = sbr.rel (%p434) target = $region76
        $region75: #{tpu_custom_call.1} parent=51 // pred_region
          %437 = dma.done %s430, 1024
        $region76: #{tpu_custom_call.1} parent=51 // pred_fallthru
          _
        %p438 = pneg %p49
        %p439 = pneg %p46
        %p440 = pneg %p70
        %p441 = pneg %p67
        %p442 = pneg %p91
        %p443 = pneg %p88
        %p444 = pneg %p112
        %p445 = pneg %p109
        %p446 = pneg %p133
        %p447 = pneg %p130
        %p448 = pneg %p154
        %p449 = pneg %p151
        %s450 = sand.u32 %s167, 1
        %s451 = scalar_lea.sflag [#allocation15], %s450
        %s452 = sand.u32 %s167, 1
        %s453 = smul.addr %s452, 64
        %s454 = scalar_lea.vmem [#allocation14], %s453
        %p455 = pneg %p180
        %p456 = pneg %p177
        %p457 = scmp.lt.s32.totalorder %s33, 3
        %s458 = scalar_select %p457, %s33, 3
        %s459 = scalar_lea.vmem %s7, %s458
        %p460 = pneg %p206
        %p461 = pneg %p203
        %p462 = pneg %p232
        %p463 = pneg %p229
        %s464 = sand.u32 %s219, 1
        %s465 = scalar_lea.sflag [#allocation7], %s464
        %s466 = sand.u32 %s219, 1
        %s467 = smul.addr %s466, 2
        %s468 = scalar_lea.vmem [#allocation16], %s467
        %p469 = pneg %p253
        %p470 = pneg %p250
        %p471 = pneg %p274
        %p472 = pneg %p271
        %p473 = pneg %p295
        %p474 = pneg %p292
        %p475 = scmp.lt.s32.totalorder %s33, 3
        %s476 = scalar_select %p475, %s33, 3
        %s477 = scalar_lea.vmem %s7, %s476
        %p479 = scmp.eq.s32.totalorder %s33, 0
        // Predicated region
        $region77: #{tpu_custom_call.1} parent=51 // pred_check
          %p480 = pneg %p479
        $region78: #{tpu_custom_call.1} parent=51 // pred_check_branch
          %482 = sbr.rel (%p480) target = $region80
        $region79: #{tpu_custom_call.1} parent=51 // pred_region
          %v483 = vld [vmem:[#allocation8] sm:$0x3]
          %v484 = vld [vmem:[#allocation5] sm:$0x1]
          %v485 = vpack.c.bf16 %v483, %v483
          %v486 = vld [vmem:[#allocation11] sm:$0xff]
          %v487 = vld [vmem:[#allocation11 + $0x8] sm:$0xff]
          %v488 = vld [vmem:[#allocation11 + $0x10] sm:$0xff]
          %v489 = vld [vmem:[#allocation11 + $0x18] sm:$0xff]
          %v490 = vld [vmem:[#allocation11 + $0x20] sm:$0xff]
          %v491 = vld [vmem:[#allocation11 + $0x28] sm:$0xff]
          %v492 = vld [vmem:[#allocation11 + $0x30] sm:$0xff]
          %v493 = vld [vmem:[#allocation11 + $0x38] sm:$0xff]
          %v494 = vld [vmem:[#allocation11 + $0x40] sm:$0xff]
          %v495 = vld [vmem:[#allocation11 + $0x48] sm:$0xff]
          %v496 = vld [vmem:[#allocation11 + $0x50] sm:$0xff]
          %v497 = vld [vmem:[#allocation11 + $0x58] sm:$0xff]
          %v498 = vld [vmem:[#allocation11 + $0x60] sm:$0xff]
          %v499 = vld [vmem:[#allocation11 + $0x68] sm:$0xff]
          %v500 = vld [vmem:[#allocation11 + $0x70] sm:$0xff]
          %v501 = vld [vmem:[#allocation11 + $0x78] sm:$0xff]
          %v502 = vld [vmem:[#allocation11 + $0x80] sm:$0xff]
          %v503 = vld [vmem:[#allocation11 + $0x88] sm:$0xff]
          %v504 = vld [vmem:[#allocation11 + $0x90] sm:$0xff]
          %v505 = vld [vmem:[#allocation11 + $0x98] sm:$0xff]
          %v506 = vld [vmem:[#allocation11 + $0xa0] sm:$0xff]
          %v507 = vld [vmem:[#allocation11 + $0xa8] sm:$0xff]
          %v508 = vld [vmem:[#allocation11 + $0xb0] sm:$0xff]
          %v509 = vld [vmem:[#allocation11 + $0xb8] sm:$0xff]
          %v510 = vld [vmem:[#allocation11 + $0xc0] sm:$0xff]
          %v511 = vld [vmem:[#allocation11 + $0xc8] sm:$0xff]
          %v512 = vld [vmem:[#allocation11 + $0xd0] sm:$0xff]
          %v513 = vld [vmem:[#allocation11 + $0xd8] sm:$0xff]
          %v514 = vld [vmem:[#allocation11 + $0xe0] sm:$0xff]
          %v515 = vld [vmem:[#allocation11 + $0xe8] sm:$0xff]
          %v516 = vld [vmem:[#allocation11 + $0xf0] sm:$0xff]
          %v517 = vld [vmem:[#allocation11 + $0xf8] sm:$0xff]
          %v518 = vld [vmem:[#allocation13] sm:$0xff]
          %v519 = vld [vmem:[#allocation13 + $0x8] sm:$0xff]
          %v520 = vld [vmem:[#allocation13 + $0x10] sm:$0xff]
          %v521 = vld [vmem:[#allocation13 + $0x18] sm:$0xff]
          %v522 = vld [vmem:[#allocation13 + $0x20] sm:$0xff]
          %v523 = vld [vmem:[#allocation13 + $0x28] sm:$0xff]
          %v524 = vld [vmem:[#allocation13 + $0x30] sm:$0xff]
          %v525 = vld [vmem:[#allocation13 + $0x38] sm:$0xff]
          %v526 = vld [vmem:[#allocation13 + $0x40] sm:$0xff]
          %v527 = vld [vmem:[#allocation13 + $0x48] sm:$0xff]
          %v528 = vld [vmem:[#allocation13 + $0x50] sm:$0xff]
          %v529 = vld [vmem:[#allocation13 + $0x58] sm:$0xff]
          %v530 = vld [vmem:[#allocation13 + $0x60] sm:$0xff]
          %v531 = vld [vmem:[#allocation13 + $0x68] sm:$0xff]
          %v532 = vld [vmem:[#allocation13 + $0x70] sm:$0xff]
          %v533 = vld [vmem:[#allocation13 + $0x78] sm:$0xff]
          %v534 = vld [vmem:[#allocation13 + $0x80] sm:$0xff]
          %v535 = vld [vmem:[#allocation13 + $0x88] sm:$0xff]
          %v536 = vld [vmem:[#allocation13 + $0x90] sm:$0xff]
          %v537 = vld [vmem:[#allocation13 + $0x98] sm:$0xff]
          %v538 = vld [vmem:[#allocation13 + $0xa0] sm:$0xff]
          %v539 = vld [vmem:[#allocation13 + $0xa8] sm:$0xff]
          %v540 = vld [vmem:[#allocation13 + $0xb0] sm:$0xff]
          %v541 = vld [vmem:[#allocation13 + $0xb8] sm:$0xff]
          %v542 = vld [vmem:[#allocation13 + $0xc0] sm:$0xff]
          %v543 = vld [vmem:[#allocation13 + $0xc8] sm:$0xff]
          %v544 = vld [vmem:[#allocation13 + $0xd0] sm:$0xff]
          %v545 = vld [vmem:[#allocation13 + $0xd8] sm:$0xff]
          %v546 = vld [vmem:[#allocation13 + $0xe0] sm:$0xff]
          %v547 = vld [vmem:[#allocation13 + $0xe8] sm:$0xff]
          %v548 = vld [vmem:[#allocation13 + $0xf0] sm:$0xff]
          %v549 = vld [vmem:[#allocation13 + $0xf8] sm:$0xff]
          %v582 = vunpack.c.l.b16 %v518
          %v583 = vunpack.c.h.b16 %v518
          %v584 = vunpack.c.l.b16 %v519
          %v585 = vunpack.c.h.b16 %v519
          %v586 = vunpack.c.l.b16 %v520
          %v587 = vunpack.c.h.b16 %v520
          %v588 = vunpack.c.l.b16 %v521
          %v589 = vunpack.c.h.b16 %v521
          %v590 = vunpack.c.l.b16 %v522
          %v591 = vunpack.c.h.b16 %v522
          %v592 = vunpack.c.l.b16 %v523
          %v593 = vunpack.c.h.b16 %v523
          %v594 = vunpack.c.l.b16 %v524
          %v595 = vunpack.c.h.b16 %v524
          %v596 = vunpack.c.l.b16 %v525
          %v597 = vunpack.c.h.b16 %v525
          %v598 = vunpack.c.l.b16 %v526
          %v599 = vunpack.c.h.b16 %v526
          %v600 = vunpack.c.l.b16 %v527
          %v601 = vunpack.c.h.b16 %v527
          %v602 = vunpack.c.l.b16 %v528
          %v603 = vunpack.c.h.b16 %v528
          %v604 = vunpack.c.l.b16 %v529
          %v605 = vunpack.c.h.b16 %v529
          %v606 = vunpack.c.l.b16 %v530
          %v607 = vunpack.c.h.b16 %v530
          %v608 = vunpack.c.l.b16 %v531
          %v609 = vunpack.c.h.b16 %v531
          %v610 = vunpack.c.l.b16 %v532
          %v611 = vunpack.c.h.b16 %v532
          %v612 = vunpack.c.l.b16 %v533
          %v613 = vunpack.c.h.b16 %v533
          %v614 = vunpack.c.l.b16 %v534
          %v615 = vunpack.c.h.b16 %v534
          %v616 = vunpack.c.l.b16 %v535
          %v617 = vunpack.c.h.b16 %v535
          %v618 = vunpack.c.l.b16 %v536
          %v619 = vunpack.c.h.b16 %v536
          %v620 = vunpack.c.l.b16 %v537
          %v621 = vunpack.c.h.b16 %v537
          %v622 = vunpack.c.l.b16 %v538
          %v623 = vunpack.c.h.b16 %v538
          %v624 = vunpack.c.l.b16 %v539
          %v625 = vunpack.c.h.b16 %v539
          %v626 = vunpack.c.l.b16 %v540
          %v627 = vunpack.c.h.b16 %v540
          %v628 = vunpack.c.l.b16 %v541
          %v629 = vunpack.c.h.b16 %v541
          %v630 = vunpack.c.l.b16 %v542
          %v631 = vunpack.c.h.b16 %v542
          %v632 = vunpack.c.l.b16 %v543
          %v633 = vunpack.c.h.b16 %v543
          %v634 = vunpack.c.l.b16 %v544
          %v635 = vunpack.c.h.b16 %v544
          %v636 = vunpack.c.l.b16 %v545
          %v637 = vunpack.c.h.b16 %v545
          %v638 = vunpack.c.l.b16 %v546
          %v639 = vunpack.c.h.b16 %v546
          %v640 = vunpack.c.l.b16 %v547
          %v641 = vunpack.c.h.b16 %v547
          %v642 = vunpack.c.l.b16 %v548
          %v643 = vunpack.c.h.b16 %v548
          %v644 = vunpack.c.l.b16 %v549
          %v645 = vunpack.c.h.b16 %v549
          %v646 = vpack.c.b16 %v586, %v582
          %v647 = vpack.c.b16 %v587, %v583
          %v648 = vpack.c.b16 %v588, %v584
          %v649 = vpack.c.b16 %v589, %v585
          %v650 = vpack.c.b16 %v594, %v590
          %v651 = vpack.c.b16 %v595, %v591
          %v652 = vpack.c.b16 %v596, %v592
          %v653 = vpack.c.b16 %v597, %v593
          %v654 = vpack.c.b16 %v602, %v598
          %v655 = vpack.c.b16 %v603, %v599
          %v656 = vpack.c.b16 %v604, %v600
          %v657 = vpack.c.b16 %v605, %v601
          %v658 = vpack.c.b16 %v610, %v606
          %v659 = vpack.c.b16 %v611, %v607
          %v660 = vpack.c.b16 %v612, %v608
          %v661 = vpack.c.b16 %v613, %v609
          %v662 = vpack.c.b16 %v618, %v614
          %v663 = vpack.c.b16 %v619, %v615
          %v664 = vpack.c.b16 %v620, %v616
          %v665 = vpack.c.b16 %v621, %v617
          %v666 = vpack.c.b16 %v626, %v622
          %v667 = vpack.c.b16 %v627, %v623
          %v668 = vpack.c.b16 %v628, %v624
          %v669 = vpack.c.b16 %v629, %v625
          %v670 = vpack.c.b16 %v634, %v630
          %v671 = vpack.c.b16 %v635, %v631
          %v672 = vpack.c.b16 %v636, %v632
          %v673 = vpack.c.b16 %v637, %v633
          %v674 = vpack.c.b16 %v642, %v638
          %v675 = vpack.c.b16 %v643, %v639
          %v676 = vpack.c.b16 %v644, %v640
          %v677 = vpack.c.b16 %v645, %v641
          %710 = vmatprep.subr.bf16.mxu0 %v675
          %711 = vmatpush1.bf16.msra.mxu0 %v674
          %712 = vmatprep.subr.bf16.mxu0 %v671
          %713 = vmatpush1.bf16.msra.mxu0 %v670
          %714 = vmatprep.subr.bf16.mxu0 %v667
          %715 = vmatpush1.bf16.msra.mxu0 %v666
          %716 = vmatprep.subr.bf16.mxu0 %v663
          %717 = vmatpush1.bf16.msra.mxu0 %v662
          %718 = vmatprep.subr.bf16.mxu0 %v659
          %719 = vmatpush1.bf16.msra.mxu0 %v658
          %720 = vmatprep.subr.bf16.mxu0 %v655
          %721 = vmatpush1.bf16.msra.mxu0 %v654
          %722 = vmatprep.subr.bf16.mxu0 %v651
          %723 = vmatpush1.bf16.msra.mxu0 %v650
          %724 = vmatprep.subr.bf16.mxu0 %v647
          %725 = vmatpush1.bf16.msra.mxu0 %v646
          %726 = vmatprep.subr.bf16.mxu0 0
          %727 = vmatpush2.bf16.msra.mxu0 0
          %728 = vmatprep.subr.bf16.mxu0 0
          %729 = vmatpush2.bf16.msra.mxu0 0
          %730 = vmatprep.subr.bf16.mxu0 0
          %731 = vmatpush2.bf16.msra.mxu0 0
          %732 = vmatprep.subr.bf16.mxu0 0
          %733 = vmatpush2.bf16.msra.mxu0 0
          %734 = vmatprep.subr.bf16.mxu0 0
          %735 = vmatpush2.bf16.msra.mxu0 0
          %736 = vmatprep.subr.bf16.mxu0 0
          %737 = vmatpush2.bf16.msra.mxu0 0
          %738 = vmatprep.subr.bf16.mxu0 0
          %739 = vmatpush2.bf16.msra.mxu0 0
          %740 = vmatprep.subr.bf16.mxu0 0
          %741 = vmatpush2.bf16.msra.mxu0 0
          %742 = vmatprep.mubr.bf16.mxu0 0
          %743 = vmatmul.mubr.bf16.gmra.mxu0 %v485
          %v744 = vpop.f32.mrf.mxu0
          %v745 = vadd.f32 0.0, %v744
          %v746 = vpop.f32.mrf.mxu0
          %v747 = vadd.f32 0.0, %v746
          %v748 = vpop.f32.mrf.mxu0
          %v749 = vpop.f32.mrf.mxu0
          %750 = vdwg.mxu0
          %751 = vmatprep.subr.bf16.mxu0 %v677
          %752 = vmatpush1.bf16.msra.mxu0 %v676
          %753 = vmatprep.subr.bf16.mxu0 %v673
          %754 = vmatpush1.bf16.msra.mxu0 %v672
          %755 = vmatprep.subr.bf16.mxu0 %v669
          %756 = vmatpush1.bf16.msra.mxu0 %v668
          %757 = vmatprep.subr.bf16.mxu0 %v665
          %758 = vmatpush1.bf16.msra.mxu0 %v664
          %759 = vmatprep.subr.bf16.mxu0 %v661
          %760 = vmatpush1.bf16.msra.mxu0 %v660
          %761 = vmatprep.subr.bf16.mxu0 %v657
          %762 = vmatpush1.bf16.msra.mxu0 %v656
          %763 = vmatprep.subr.bf16.mxu0 %v653
          %764 = vmatpush1.bf16.msra.mxu0 %v652
          %765 = vmatprep.subr.bf16.mxu0 %v649
          %766 = vmatpush1.bf16.msra.mxu0 %v648
          %767 = vmatprep.subr.bf16.mxu0 0
          %768 = vmatpush2.bf16.msra.mxu0 0
          %769 = vmatprep.subr.bf16.mxu0 0
          %770 = vmatpush2.bf16.msra.mxu0 0
          %771 = vmatprep.subr.bf16.mxu0 0
          %772 = vmatpush2.bf16.msra.mxu0 0
          %773 = vmatprep.subr.bf16.mxu0 0
          %774 = vmatpush2.bf16.msra.mxu0 0
          %775 = vmatprep.subr.bf16.mxu0 0
          %776 = vmatpush2.bf16.msra.mxu0 0
          %777 = vmatprep.subr.bf16.mxu0 0
          %778 = vmatpush2.bf16.msra.mxu0 0
          %779 = vmatprep.subr.bf16.mxu0 0
          %780 = vmatpush2.bf16.msra.mxu0 0
          %781 = vmatprep.subr.bf16.mxu0 0
          %782 = vmatpush2.bf16.msra.mxu0 0
          %783 = vmatprep.mubr.bf16.mxu0 0
          %784 = vmatmul.mubr.bf16.gmra.mxu0 %v485
          %v785 = vpop.f32.mrf.mxu0
          %v786 = vadd.f32 0.0, %v785
          %v787 = vpop.f32.mrf.mxu0
          %v788 = vadd.f32 0.0, %v787
          %v789 = vpop.f32.mrf.mxu0
          %v790 = vpop.f32.mrf.mxu0
          %791 = vdwg.mxu0
          %v824 = vunpack.c.l.b16 %v486
          %v825 = vunpack.c.h.b16 %v486
          %v826 = vunpack.c.l.b16 %v487
          %v827 = vunpack.c.h.b16 %v487
          %v828 = vunpack.c.l.b16 %v488
          %v829 = vunpack.c.h.b16 %v488
          %v830 = vunpack.c.l.b16 %v489
          %v831 = vunpack.c.h.b16 %v489
          %v832 = vunpack.c.l.b16 %v490
          %v833 = vunpack.c.h.b16 %v490
          %v834 = vunpack.c.l.b16 %v491
          %v835 = vunpack.c.h.b16 %v491
          %v836 = vunpack.c.l.b16 %v492
          %v837 = vunpack.c.h.b16 %v492
          %v838 = vunpack.c.l.b16 %v493
          %v839 = vunpack.c.h.b16 %v493
          %v840 = vunpack.c.l.b16 %v494
          %v841 = vunpack.c.h.b16 %v494
          %v842 = vunpack.c.l.b16 %v495
          %v843 = vunpack.c.h.b16 %v495
          %v844 = vunpack.c.l.b16 %v496
          %v845 = vunpack.c.h.b16 %v496
          %v846 = vunpack.c.l.b16 %v497
          %v847 = vunpack.c.h.b16 %v497
          %v848 = vunpack.c.l.b16 %v498
          %v849 = vunpack.c.h.b16 %v498
          %v850 = vunpack.c.l.b16 %v499
          %v851 = vunpack.c.h.b16 %v499
          %v852 = vunpack.c.l.b16 %v500
          %v853 = vunpack.c.h.b16 %v500
          %v854 = vunpack.c.l.b16 %v501
          %v855 = vunpack.c.h.b16 %v501
          %v856 = vunpack.c.l.b16 %v502
          %v857 = vunpack.c.h.b16 %v502
          %v858 = vunpack.c.l.b16 %v503
          %v859 = vunpack.c.h.b16 %v503
          %v860 = vunpack.c.l.b16 %v504
          %v861 = vunpack.c.h.b16 %v504
          %v862 = vunpack.c.l.b16 %v505
          %v863 = vunpack.c.h.b16 %v505
          %v864 = vunpack.c.l.b16 %v506
          %v865 = vunpack.c.h.b16 %v506
          %v866 = vunpack.c.l.b16 %v507
          %v867 = vunpack.c.h.b16 %v507
          %v868 = vunpack.c.l.b16 %v508
          %v869 = vunpack.c.h.b16 %v508
          %v870 = vunpack.c.l.b16 %v509
          %v871 = vunpack.c.h.b16 %v509
          %v872 = vunpack.c.l.b16 %v510
          %v873 = vunpack.c.h.b16 %v510
          %v874 = vunpack.c.l.b16 %v511
          %v875 = vunpack.c.h.b16 %v511
          %v876 = vunpack.c.l.b16 %v512
          %v877 = vunpack.c.h.b16 %v512
          %v878 = vunpack.c.l.b16 %v513
          %v879 = vunpack.c.h.b16 %v513
          %v880 = vunpack.c.l.b16 %v514
          %v881 = vunpack.c.h.b16 %v514
          %v882 = vunpack.c.l.b16 %v515
          %v883 = vunpack.c.h.b16 %v515
          %v884 = vunpack.c.l.b16 %v516
          %v885 = vunpack.c.h.b16 %v516
          %v886 = vunpack.c.l.b16 %v517
          %v887 = vunpack.c.h.b16 %v517
          %v888 = vpack.c.b16 %v828, %v824
          %v889 = vpack.c.b16 %v829, %v825
          %v890 = vpack.c.b16 %v830, %v826
          %v891 = vpack.c.b16 %v831, %v827
          %v892 = vpack.c.b16 %v836, %v832
          %v893 = vpack.c.b16 %v837, %v833
          %v894 = vpack.c.b16 %v838, %v834
          %v895 = vpack.c.b16 %v839, %v835
          %v896 = vpack.c.b16 %v844, %v840
          %v897 = vpack.c.b16 %v845, %v841
          %v898 = vpack.c.b16 %v846, %v842
          %v899 = vpack.c.b16 %v847, %v843
          %v900 = vpack.c.b16 %v852, %v848
          %v901 = vpack.c.b16 %v853, %v849
          %v902 = vpack.c.b16 %v854, %v850
          %v903 = vpack.c.b16 %v855, %v851
          %v904 = vpack.c.b16 %v860, %v856
          %v905 = vpack.c.b16 %v861, %v857
          %v906 = vpack.c.b16 %v862, %v858
          %v907 = vpack.c.b16 %v863, %v859
          %v908 = vpack.c.b16 %v868, %v864
          %v909 = vpack.c.b16 %v869, %v865
          %v910 = vpack.c.b16 %v870, %v866
          %v911 = vpack.c.b16 %v871, %v867
          %v912 = vpack.c.b16 %v876, %v872
          %v913 = vpack.c.b16 %v877, %v873
          %v914 = vpack.c.b16 %v878, %v874
          %v915 = vpack.c.b16 %v879, %v875
          %v916 = vpack.c.b16 %v884, %v880
          %v917 = vpack.c.b16 %v885, %v881
          %v918 = vpack.c.b16 %v886, %v882
          %v919 = vpack.c.b16 %v887, %v883
          %952 = vmatprep.subr.bf16.mxu0 %v917
          %953 = vmatpush1.bf16.msra.mxu0 %v916
          %954 = vmatprep.subr.bf16.mxu0 %v913
          %955 = vmatpush1.bf16.msra.mxu0 %v912
          %956 = vmatprep.subr.bf16.mxu0 %v909
          %957 = vmatpush1.bf16.msra.mxu0 %v908
          %958 = vmatprep.subr.bf16.mxu0 %v905
          %959 = vmatpush1.bf16.msra.mxu0 %v904
          %960 = vmatprep.subr.bf16.mxu0 %v901
          %961 = vmatpush1.bf16.msra.mxu0 %v900
          %962 = vmatprep.subr.bf16.mxu0 %v897
          %963 = vmatpush1.bf16.msra.mxu0 %v896
          %964 = vmatprep.subr.bf16.mxu0 %v893
          %965 = vmatpush1.bf16.msra.mxu0 %v892
          %966 = vmatprep.subr.bf16.mxu0 %v889
          %967 = vmatpush1.bf16.msra.mxu0 %v888
          %968 = vmatprep.subr.bf16.mxu0 0
          %969 = vmatpush2.bf16.msra.mxu0 0
          %970 = vmatprep.subr.bf16.mxu0 0
          %971 = vmatpush2.bf16.msra.mxu0 0
          %972 = vmatprep.subr.bf16.mxu0 0
          %973 = vmatpush2.bf16.msra.mxu0 0
          %974 = vmatprep.subr.bf16.mxu0 0
          %975 = vmatpush2.bf16.msra.mxu0 0
          %976 = vmatprep.subr.bf16.mxu0 0
          %977 = vmatpush2.bf16.msra.mxu0 0
          %978 = vmatprep.subr.bf16.mxu0 0
          %979 = vmatpush2.bf16.msra.mxu0 0
          %980 = vmatprep.subr.bf16.mxu0 0
          %981 = vmatpush2.bf16.msra.mxu0 0
          %982 = vmatprep.subr.bf16.mxu0 0
          %983 = vmatpush2.bf16.msra.mxu0 0
          %984 = vmatprep.mubr.bf16.mxu0 0
          %985 = vmatmul.mubr.bf16.gmra.mxu0 %v484
          %v986 = vpop.f32.mrf.mxu0
          %v987 = vadd.f32 %v745, %v986
          %v988 = vpop.f32.mrf.mxu0
          %v989 = vadd.f32 %v747, %v988
          %v990 = vpop.f32.mrf.mxu0
          %v991 = vpop.f32.mrf.mxu0
          %992 = vdwg.mxu0
          %993 = vmatprep.subr.bf16.mxu0 %v919
          %994 = vmatpush1.bf16.msra.mxu0 %v918
          %995 = vmatprep.subr.bf16.mxu0 %v915
          %996 = vmatpush1.bf16.msra.mxu0 %v914
          %997 = vmatprep.subr.bf16.mxu0 %v911
          %998 = vmatpush1.bf16.msra.mxu0 %v910
          %999 = vmatprep.subr.bf16.mxu0 %v907
          %1000 = vmatpush1.bf16.msra.mxu0 %v906
          %1001 = vmatprep.subr.bf16.mxu0 %v903
          %1002 = vmatpush1.bf16.msra.mxu0 %v902
          %1003 = vmatprep.subr.bf16.mxu0 %v899
          %1004 = vmatpush1.bf16.msra.mxu0 %v898
          %1005 = vmatprep.subr.bf16.mxu0 %v895
          %1006 = vmatpush1.bf16.msra.mxu0 %v894
          %1007 = vmatprep.subr.bf16.mxu0 %v891
          %1008 = vmatpush1.bf16.msra.mxu0 %v890
          %1009 = vmatprep.subr.bf16.mxu0 0
          %1010 = vmatpush2.bf16.msra.mxu0 0
          %1011 = vmatprep.subr.bf16.mxu0 0
          %1012 = vmatpush2.bf16.msra.mxu0 0
          %1013 = vmatprep.subr.bf16.mxu0 0
          %1014 = vmatpush2.bf16.msra.mxu0 0
          %1015 = vmatprep.subr.bf16.mxu0 0
          %1016 = vmatpush2.bf16.msra.mxu0 0
          %1017 = vmatprep.subr.bf16.mxu0 0
          %1018 = vmatpush2.bf16.msra.mxu0 0
          %1019 = vmatprep.subr.bf16.mxu0 0
          %1020 = vmatpush2.bf16.msra.mxu0 0
          %1021 = vmatprep.subr.bf16.mxu0 0
          %1022 = vmatpush2.bf16.msra.mxu0 0
          %1023 = vmatprep.subr.bf16.mxu0 0
          %1024 = vmatpush2.bf16.msra.mxu0 0
          %1025 = vmatprep.mubr.bf16.mxu0 0
          %1026 = vmatmul.mubr.bf16.gmra.mxu0 %v484
          %v1027 = vpop.f32.mrf.mxu0
          %v1028 = vadd.f32 %v786, %v1027
          %v1029 = vpop.f32.mrf.mxu0
          %v1030 = vadd.f32 %v788, %v1029
          %v1031 = vpop.f32.mrf.mxu0
          %v1032 = vpop.f32.mrf.mxu0
          %1033 = vdwg.mxu0
          %v1034 = vld [vmem:[%s5] sm:$0xf]
          %v1036 = vlaneseq
          %v1037 = vshrl.u32 %v1036, 7
          %v1038 = vsub.s32 0, %v1037
          %v1039 = vrot.slane %v1034, %v1038
          %v1040 = vlaneseq
          %v1041 = vshrl.u32 %v1040, 7
          %v1042 = vsub.s32 1, %v1041
          %v1043 = vrot.slane %v1034, %v1042
          %v1044 = vlaneseq
          %v1045 = vshrl.u32 %v1044, 7
          %v1046 = vsub.s32 2, %v1045
          %v1047 = vrot.slane %v1034, %v1046
          %v1048 = vlaneseq
          %v1049 = vshrl.u32 %v1048, 7
          %v1050 = vsub.s32 3, %v1049
          %v1051 = vrot.slane %v1034, %v1050
          %v1056 = vadd.f32 %v987, %v1039
          %v1057 = vadd.f32 %v989, %v1043
          %v1058 = vadd.f32 %v1028, %v1047
          %v1059 = vadd.f32 %v1030, %v1051
          %v1060 = vxor.u32 %v1056, 2147483648
          %v1061 = vmul.f32 %v1060, 1.442695
          %v1062 = vpow.pop %v1061
          %v1063 = vadd.f32 %v1062, 1.0
          %v1064 = vrcp.pop %v1063
          %v1065 = vmul.f32 1.0, %v1064
          %v1066 = vxor.u32 %v1057, 2147483648
          %v1067 = vmul.f32 %v1066, 1.442695
          %v1068 = vpow.pop %v1067
          %v1069 = vadd.f32 %v1068, 1.0
          %v1070 = vrcp.pop %v1069
          %v1071 = vmul.f32 1.0, %v1070
          %v1072 = vtanh.pop %v1058
          %v1073 = vxor.u32 %v1059, 2147483648
          %v1074 = vmul.f32 %v1073, 1.442695
          %v1075 = vpow.pop %v1074
          %v1076 = vadd.f32 %v1075, 1.0
          %v1077 = vrcp.pop %v1076
          %v1078 = vmul.f32 1.0, %v1077
          %v1079 = vld [vmem:[#allocation10] sm:$0x3]
          %v1080 = vmul.f32 %v1071, %v1079
          %v1081 = vmul.f32 %v1065, %v1072
          %v1082 = vadd.f32 %v1080, %v1081
          %v1083 = vtanh.pop %v1082
          %v1084 = vmul.f32 %v1078, %v1083
          %1085 = vst [vmem:[#allocation17] sm:$0x3] %v1084
          %1086 = vst [vmem:[#allocation19] sm:$0x3] %v1082
          %v1087 = vpack.c.bf16 %v1084, %v1084
          %1088 = vst [vmem:[#allocation2] sm:$0x1] %v1087
          %vm1089 = vcmask 1024
          %1090 = vst.msk [vmem:[#allocation3] sm:$0x3] %vm1089, -inf
          %1091 = vst.msk [vmem:[#allocation4] sm:$0x3] %vm1089, 0.0
        $region80: #{tpu_custom_call.1} parent=51 // pred_fallthru
          _
        %v1092 = vld [vmem:[#allocation2] sm:$0x1]
        %v1093 = vld [vmem:[%s433] sm:$0xf]
        %v1094 = vld [vmem:[%s433 + $0x4] sm:$0xf]
        %v1095 = vld [vmem:[%s433 + $0x8] sm:$0xf]
        %v1096 = vld [vmem:[%s433 + $0xc] sm:$0xf]
        %v1097 = vld [vmem:[%s433 + $0x10] sm:$0xf]
        %v1098 = vld [vmem:[%s433 + $0x14] sm:$0xf]
        %v1099 = vld [vmem:[%s433 + $0x18] sm:$0xf]
        %v1100 = vld [vmem:[%s433 + $0x1c] sm:$0xf]
        %v1101 = vld [vmem:[%s433 + $0x20] sm:$0xf]
        %v1102 = vld [vmem:[%s433 + $0x24] sm:$0xf]
        %v1103 = vld [vmem:[%s433 + $0x28] sm:$0xf]
        %v1104 = vld [vmem:[%s433 + $0x2c] sm:$0xf]
        %v1105 = vld [vmem:[%s433 + $0x30] sm:$0xf]
        %v1106 = vld [vmem:[%s433 + $0x34] sm:$0xf]
        %v1107 = vld [vmem:[%s433 + $0x38] sm:$0xf]
        %v1108 = vld [vmem:[%s433 + $0x3c] sm:$0xf]
        %v1109 = vld [vmem:[%s477] sm:$0x1]
        %v1111 = vlaneseq
        %v1112 = vshrl.u32 %v1111, 7
        %v1113 = vsub.s32 0, %v1112
        %v1114 = vrot.slane %v1109, %v1113
        %v1132 = vunpack.c.l.b16 %v1093
        %v1133 = vunpack.c.l.b16 %v1094
        %v1134 = vunpack.c.l.b16 %v1095
        %v1135 = vunpack.c.l.b16 %v1096
        %v1136 = vunpack.c.l.b16 %v1097
        %v1137 = vunpack.c.l.b16 %v1098
        %v1138 = vunpack.c.l.b16 %v1099
        %v1139 = vunpack.c.l.b16 %v1100
        %v1140 = vunpack.c.l.b16 %v1101
        %v1141 = vunpack.c.l.b16 %v1102
        %v1142 = vunpack.c.l.b16 %v1103
        %v1143 = vunpack.c.l.b16 %v1104
        %v1144 = vunpack.c.l.b16 %v1105
        %v1145 = vunpack.c.l.b16 %v1106
        %v1146 = vunpack.c.l.b16 %v1107
        %v1147 = vunpack.c.l.b16 %v1108
        %v1148 = vpack.c.b16 %v1133, %v1132
        %v1149 = vpack.c.b16 %v1135, %v1134
        %v1150 = vpack.c.b16 %v1137, %v1136
        %v1151 = vpack.c.b16 %v1139, %v1138
        %v1152 = vpack.c.b16 %v1141, %v1140
        %v1153 = vpack.c.b16 %v1143, %v1142
        %v1154 = vpack.c.b16 %v1145, %v1144
        %v1155 = vpack.c.b16 %v1147, %v1146
        %1164 = vmatprep.subr.bf16.mxu0 0
        %1165 = vmatpush1.bf16.msra.mxu0 %v1155
        %1166 = vmatprep.subr.bf16.mxu0 0
        %1167 = vmatpush1.bf16.msra.mxu0 %v1154
        %1168 = vmatprep.subr.bf16.mxu0 0
        %1169 = vmatpush1.bf16.msra.mxu0 %v1153
        %1170 = vmatprep.subr.bf16.mxu0 0
        %1171 = vmatpush1.bf16.msra.mxu0 %v1152
        %1172 = vmatprep.subr.bf16.mxu0 0
        %1173 = vmatpush1.bf16.msra.mxu0 %v1151
        %1174 = vmatprep.subr.bf16.mxu0 0
        %1175 = vmatpush1.bf16.msra.mxu0 %v1150
        %1176 = vmatprep.subr.bf16.mxu0 0
        %1177 = vmatpush1.bf16.msra.mxu0 %v1149
        %1178 = vmatprep.subr.bf16.mxu0 0
        %1179 = vmatpush1.bf16.msra.mxu0 %v1148
        %1180 = vmatprep.subr.bf16.mxu0 0
        %1181 = vmatpush2.bf16.msra.mxu0 0
        %1182 = vmatprep.subr.bf16.mxu0 0
        %1183 = vmatpush2.bf16.msra.mxu0 0
        %1184 = vmatprep.subr.bf16.mxu0 0
        %1185 = vmatpush2.bf16.msra.mxu0 0
        %1186 = vmatprep.subr.bf16.mxu0 0
        %1187 = vmatpush2.bf16.msra.mxu0 0
        %1188 = vmatprep.subr.bf16.mxu0 0
        %1189 = vmatpush2.bf16.msra.mxu0 0
        %1190 = vmatprep.subr.bf16.mxu0 0
        %1191 = vmatpush2.bf16.msra.mxu0 0
        %1192 = vmatprep.subr.bf16.mxu0 0
        %1193 = vmatpush2.bf16.msra.mxu0 0
        %1194 = vmatprep.subr.bf16.mxu0 0
        %1195 = vmatpush2.bf16.msra.mxu0 0
        %1196 = vmatprep.mubr.bf16.mxu0 0
        %1197 = vmatmul.mubr.bf16.gmra.mxu0 %v1092
        %v1198 = vpop.f32.mrf.mxu0
        %v1199 = vadd.f32 %v1114, %v1198
        %v1200 = vpop.f32.mrf.mxu0
        %v1201 = vpop.f32.mrf.mxu0
        %v1202 = vpop.f32.mrf.mxu0
        %1203 = vdwg.mxu0
        %1204 = vst [vmem:[%s468] sm:$0x3] %v1199
        %v1205 = vld [vmem:[#allocation3] sm:$0x3]
        %vm1206 = vcmask 1041408
        %v1207 = vsel %vm1206, %v1199, -inf
        %1208 = vmax.xlane.f32.xlu0 %v1207
        %v1209 = vpop.xlane.xlu0 %1208
        %v1210 = vmax.f32 %v1205, %v1209
        %v1211 = vld [vmem:[#allocation4] sm:$0x3]
        %v1212 = vsub.f32 %v1205, %v1210
        %v1213 = vmul.f32 %v1212, 1.442695
        %v1214 = vpow.pop %v1213
        %v1215 = vmul.f32 %v1211, %v1214
        %1217 = vset.pattern.permute.xlu0 0
        %1218 = vperm.xlu0 %1217, %v1210
        %v1219 = vpop.permute.xlu0 %1218
        %v1221 = vsub.f32 %v1199, %v1219
        %v1222 = vmul.f32 %v1221, 1.442695
        %v1223 = vpow.pop %v1222
        %v1224 = vsel %vm1206, %v1223, 0.0
        %1225 = vadd.xlane.f32.xlu0 %v1224
        %v1226 = vpop.xlane.xlu0 %1225
        %v1227 = vadd.f32 %v1215, %v1226
        %vm1228 = vcmask 1024
        %1229 = vst.msk [vmem:[#allocation3] sm:$0x3] %vm1228, %v1210
        %1230 = vst.msk [vmem:[#allocation4] sm:$0x3] %vm1228, %v1227
        %v1231 = vlog2.pop %v1227
        %v1232 = vmul.f32 %v1231, 0.6931472
        %v1233 = vadd.f32 %v1210, %v1232
        %1234 = vst.msk [vmem:[%s11] sm:$0x3] %vm1228, %v1233
        %s1235 = sand.u32 %s219, 1
        %s1236 = scalar_lea.sflag [#allocation7], %s1235
        %s1237 = sand.u32 %s219, 1
        %s1238 = smul.addr %s1237, 2
        %s1239 = scalar_lea.vmem [#allocation16], %s1238
        // Predicated region
        $region81: #{tpu_custom_call.1} parent=51 // pred_check
          %p1240 = pneg %p229
        $region82: #{tpu_custom_call.1} parent=51 // pred_check_branch
          %1242 = sbr.rel (%p1240) target = $region84
        $region83: #{tpu_custom_call.1} parent=51 // pred_region
          %s1244 = ssub.s32 32, 32
          %1245 = vsyncadd %s1236, %s1244
          %s1246 = smul.addr %s33, 32
          %s1247 = scalar_lea.hbm %s8, %s1246
          %s1249 = sshll.u32 %s1239, 4
          %s1250 = int_to_ptr.vmem [resolvable:$true] %s1249
          %1252 = dma.vmem_to_hbm [thread:$0]  %s1250, 32, %s1247, %s1236
        $region84: #{tpu_custom_call.1} parent=51 // pred_fallthru
          _
        // Predicated region
        $region85: #{tpu_custom_call.1} parent=51 // pred_check
          %p1253 = pneg %p250
        $region86: #{tpu_custom_call.1} parent=51 // pred_check_branch
          %1255 = sbr.rel (%p1253) target = $region88
        $region87: #{tpu_custom_call.1} parent=51 // pred_region
          %s1257 = ssub.s32 32, 32
          %1258 = vsyncadd [#allocation18], %s1257
          %s1260 = sshll.u32 [#allocation17], 4
          %s1261 = int_to_ptr.vmem [resolvable:$true] %s1260
          %1263 = dma.vmem_to_hbm [thread:$0]  %s1261, 32, %s9, [#allocation18]
        $region88: #{tpu_custom_call.1} parent=51 // pred_fallthru
          _
        // Predicated region
        $region89: #{tpu_custom_call.1} parent=51 // pred_check
          %p1264 = pneg %p271
        $region90: #{tpu_custom_call.1} parent=51 // pred_check_branch
          %1266 = sbr.rel (%p1264) target = $region92
        $region91: #{tpu_custom_call.1} parent=51 // pred_region
          %s1268 = ssub.s32 32, 32
          %1269 = vsyncadd [#allocation18], %s1268
          %s1271 = sshll.u32 [#allocation19], 4
          %s1272 = int_to_ptr.vmem [resolvable:$true] %s1271
          %1274 = dma.vmem_to_hbm [thread:$0]  %s1272, 32, %s10, [#allocation18]
        $region92: #{tpu_custom_call.1} parent=51 // pred_fallthru
          _
        // Predicated region
        $region93: #{tpu_custom_call.1} parent=51 // pred_check
          %p1275 = pneg %p292
        $region94: #{tpu_custom_call.1} parent=51 // pred_check_branch
          %1277 = sbr.rel (%p1275) target = $region96
        $region95: #{tpu_custom_call.1} parent=51 // pred_region
          _
        $region96: #{tpu_custom_call.1} parent=51 // pred_fallthru
          _
        // Predicated region
        $region97: #{tpu_custom_call.1} parent=51 // pred_check
          %p1278 = pneg %p250
        $region98: #{tpu_custom_call.1} parent=51 // pred_check_branch
          %1280 = sbr.rel (%p1278) target = $region100
        $region99: #{tpu_custom_call.1} parent=51 // pred_region
          %1281 = dma.done [#allocation18], 32
        $region100: #{tpu_custom_call.1} parent=51 // pred_fallthru
          _
        // Predicated region
        $region101: #{tpu_custom_call.1} parent=51 // pred_check
          %p1282 = pneg %p271
        $region102: #{tpu_custom_call.1} parent=51 // pred_check_branch
          %1284 = sbr.rel (%p1282) target = $region104
        $region103: #{tpu_custom_call.1} parent=51 // pred_region
          %1285 = dma.done [#allocation18], 32
        $region104: #{tpu_custom_call.1} parent=51 // pred_fallthru
          _
        // Predicated region
        $region105: #{tpu_custom_call.1} parent=51 // pred_check
          %p1286 = pneg %p292
        $region106: #{tpu_custom_call.1} parent=51 // pred_check_branch
          %1288 = sbr.rel (%p1286) target = $region108
        $region107: #{tpu_custom_call.1} parent=51 // pred_region
          _
        $region108: #{tpu_custom_call.1} parent=51 // pred_fallthru
          _
      $region52: #{tpu_custom_call.1} parent=5 // pred_fallthru
        _
      %p1289 = scmp.le.s32.totalorder 2, %s28
      // Predicated region
      $region109: #{tpu_custom_call.1} parent=5 // pred_check
        %p1290 = pneg %p1289
      $region110: #{tpu_custom_call.1} parent=5 // pred_check_branch
        %1292 = sbr.rel (%p1290) target = $region112
      $region111: #{tpu_custom_call.1} parent=5 // pred_region
        %s1293 = ssub.s32 %s28, 2
        // Predicated region
        $region113: #{tpu_custom_call.1} parent=111 // pred_check
          %p1294 = pneg %p235
        $region114: #{tpu_custom_call.1} parent=111 // pred_check_branch
          %1296 = sbr.rel (%p1294) target = $region116
        $region115: #{tpu_custom_call.1} parent=111 // pred_region
          %s1297 = sand.u32 %s220, 1
          %s1298 = scalar_lea.sflag [#allocation7], %s1297
          %s1299 = sand.u32 %s220, 1
          %s1300 = smul.addr %s1299, 2
          %s1301 = scalar_lea.vmem [#allocation16], %s1300
          %1302 = dma.done %s1298, 32
        $region116: #{tpu_custom_call.1} parent=111 // pred_fallthru
          _
      $region112: #{tpu_custom_call.1} parent=5 // pred_fallthru
        _
    $region6: #{tpu_custom_call.1} parent=1 // loop_footer
      %s32 = sadd.s32 1, %s28
    $region7: #{tpu_custom_call.1} parent=1 // loop_footer_branch
      %27 = sbr.rel target = $region3
    $region8: #{tpu_custom_call.1} parent=1 // loop_exit
      _
    %1303 = vsyncpa [#allocation6], 1
    %s1304 = scalar_lea.sflag [#allocation6], 1
    %1305 = vsyncpa %s1304, 1
    %1306 = vsyncpa [#allocation9], 1
    %1307 = vsyncpa [#allocation12], 1
    %1308 = vsyncpa [#allocation15], 1
    %s1309 = scalar_lea.sflag [#allocation15], 1
    %1310 = vsyncpa %s1309, 1
    %1311 = vsyncpa [#allocation7], 1
    %s1312 = scalar_lea.sflag [#allocation7], 1
    %1313 = vsyncpa %s1312, 1
    %1314 = vsyncpa [#allocation18], 1

</llo_original>
